<compile_context>
chip_gen: v7x
topology: tpu7x:2x2x1
jax: 0.10.0
libtpu: 0.0.40
codegen_flags: <defaults>
</compile_context>

<pallas_src>
import numpy as np
import jax
import jax.numpy as jnp
from jax.experimental import pallas as pl
from jax.experimental.pallas import tpu as pltpu


def _round_up(x, m):
    return (x + m - 1) // m * m


def _weight_spec(block_shape, index_map, nbytes):
    """BlockSpec for operands that never change along the sequential time axis.

    The default double-buffer is pure VMEM waste for these (the block is DMA'd
    once per direction); above a small size threshold request a single buffer.
    At toy sizes the default spec is kept (nothing to reclaim).
    """
    if nbytes >= (4 << 20):
        return pl.BlockSpec(block_shape, index_map, pipeline_mode=pl.Buffered(1))
    return pl.BlockSpec(block_shape, index_map)


def _vmem_limit_bytes(ts, Bp, Dp, Hp, wbytes):
    f32 = 4
    est = (
        2 * Bp * 1 * 4                       # lengths (double buffered)
        + 2 * ts * Bp * Dp * wbytes          # x chunk (double buffered)
        + 2 * Dp * 4 * Hp * wbytes           # W_ih (<= 2 buffers)
        + 2 * Hp * 4 * Hp * wbytes           # W_hh (<= 2 buffers)
        + 2 * 4 * Hp * f32                   # bias
        + 2 * Bp * Hp * f32                  # output block
        + ts * Bp * 4 * Hp * f32             # gx scratch (chunk gates)
        + 3 * Bp * Hp * f32                  # h / c / running-max scratch
    )
    # 2x headroom for compiler-internal scratch & spill; raise the default
    # scoped limit (16 MiB v5e / 32 MiB v6e), cap well below useful maxima.
    return int(min(max(2 * est, 32 << 20), 100 << 20))


# ----------------------------------------------------------------------------
# Fused bidirectional LSTM + running max kernel.
# Grid = (direction, time-chunk).  Per chunk:
#   gx[ts*Bp, 4Hp] = x_chunk @ W_ih + (b_ih + b_hh)      (one MXU GEMM, f32 acc)
#   for s in range(ts):  gates = gx[s] + h @ W_hh ; LSTM cell ; masked update.
# Direction 1 consumes a pre-time-reversed copy of x, so both directions stream
# their chunks front-to-back; the original time index is recovered for masking.
# ----------------------------------------------------------------------------
def _make_bilstm_kernel(*, ts, Bp, Hp, T_pad, T_real, compute_dtype, unroll):
    def kernel(lenv_ref, x_ref, wih_ref, b_ref, whh_ref, out_ref,
               gx_ref, h_ref, c_ref, mx_ref):
        d = pl.program_id(0)            # 0 = forward, 1 = backward (reversed x)
        ci = pl.program_id(1)           # sequential time-chunk index
        nc = pl.num_programs(1)

        @pl.when(ci == 0)
        def _init():
            h_ref[...] = jnp.zeros(h_ref.shape, h_ref.dtype)
            c_ref[...] = jnp.zeros(c_ref.shape, c_ref.dtype)
            mx_ref[...] = jnp.full(mx_ref.shape, -jnp.inf, mx_ref.dtype)

        # Fused input projection for the whole chunk (M = ts*Bp rows).
        gx_ref[...] = (
            jnp.dot(x_ref[...], wih_ref[...], preferred_element_type=jnp.float32)
            + b_ref[...])

        lenv = lenv_ref[...]            # (Bp, 1) int32 lengths, loaded once
        whh = whh_ref[...]              # (Hp, 4Hp) weights, loaded once

        def step(s, carry):
            h_prev, c_prev, mx = carry
            row = pl.multiple_of(s * Bp, Bp)
            gates = gx_ref[pl.ds(row, Bp), :] + jnp.dot(
                h_prev.astype(compute_dtype), whh,
                preferred_element_type=jnp.float32)
            # PyTorch gate order i, f, g, o; slices are lane-tile aligned.
            i_g = jax.nn.sigmoid(gates[:, 0 * Hp:1 * Hp])
            f_g = jax.nn.sigmoid(gates[:, 1 * Hp:2 * Hp])
            g_g = jnp.tanh(gates[:, 2 * Hp:3 * Hp])
            o_g = jax.nn.sigmoid(gates[:, 3 * Hp:4 * Hp])
            c_new = f_g * c_prev + i_g * g_g
            h_new = o_g * jnp.tanh(c_new)

            # Original (un-reversed) time index of this step.
            t_fwd = ci * ts + s
            t = jnp.where(d == 0, t_fwd, T_pad - 1 - t_fwd)
            valid = lenv > t                       # (Bp, 1), inside the sequence
            h = jnp.where(valid, h_new, h_prev)    # packed: state frozen on pads
            c = jnp.where(valid, c_new, c_prev)
            # pad_packed_sequence: zeros for len <= t < T;
            # alignment padding t >= T contributes nothing to the max.
            pad_contrib = jnp.where(t < T_real, 0.0, -jnp.inf)
            mx = jnp.maximum(mx, jnp.where(valid, h_new, pad_contrib))
            return h, c, mx

        carry0 = (h_ref[...], c_ref[...], mx_ref[...])
        h, c, mx = jax.lax.fori_loop(0, ts, step, carry0, unroll=unroll)
        h_ref[...] = h
        c_ref[...] = c
        mx_ref[...] = mx

        @pl.when(ci == nc - 1)
        def _finalize():
            out_ref[...] = mx

    return kernel


# ----------------------------------------------------------------------------
# Wrapper: padding to (8,128) tiles, BlockSpecs, single pallas_call.
# ----------------------------------------------------------------------------
def blstm_encoder_forward(sent, sent_len, packed, *, ts=8, unroll=None):
    T, B, D = sent.shape
    H, Hp, Dp = packed["H"], packed["Hp"], packed["Dp"]
    wdt = packed["wih"].dtype
    wbytes = jnp.dtype(wdt).itemsize
    Bp = _round_up(B, 8)
    T_pad = _round_up(T, ts)
    Tc = T_pad // ts

    if unroll is None:
        # At production Hp each step is thousands of cycles -> don't unroll.
        unroll = Hp <= 512

    # Zero-pad to tile-aligned shapes; build forward + time-reversed copies so
    # the backward direction streams its chunks front-to-back (no in-kernel
    # gather).  x is tiny compared to the (avoided) 4H gate tensors.
    x = jnp.zeros((T_pad, Bp, Dp), jnp.float32).at[:T, :B, :D].set(sent)
    x_both = (jnp.stack([x, x[::-1]], axis=0)
              .reshape(2, Tc, ts * Bp, Dp).astype(wdt))
    lenv = jnp.zeros((Bp, 1), jnp.int32).at[:B, 0].set(sent_len.astype(jnp.int32))

    kernel = _make_bilstm_kernel(ts=ts, Bp=Bp, Hp=Hp, T_pad=T_pad, T_real=T,
                                 compute_dtype=wdt, unroll=unroll)

    out = pl.pallas_call(
        kernel,
        out_shape=jax.ShapeDtypeStruct((2, Bp, Hp), jnp.float32),
        grid_spec=pltpu.PrefetchScalarGridSpec(
            num_scalar_prefetch=0,
            grid=(2, Tc),      # (direction, time-chunk); direction -> 2 TCs on v7x
            in_specs=[
                pl.BlockSpec((Bp, 1), lambda d, c: (0, 0)),                # lengths
                pl.BlockSpec((None, None, ts * Bp, Dp),
                             lambda d, c: (d, c, 0, 0)),                   # x chunk
                _weight_spec((None, Dp, 4 * Hp), lambda d, c: (d, 0, 0),
                             Dp * 4 * Hp * wbytes),                        # W_ih
                pl.BlockSpec((None, 1, 4 * Hp), lambda d, c: (d, 0, 0)),   # bias
                _weight_spec((None, Hp, 4 * Hp), lambda d, c: (d, 0, 0),
                             Hp * 4 * Hp * wbytes),                        # W_hh
            ],
            out_specs=pl.BlockSpec((None, Bp, Hp), lambda d, c: (d, 0, 0)),
            scratch_shapes=[
                pltpu.VMEM((ts * Bp, 4 * Hp), jnp.float32),   # chunk gates gx
                pltpu.VMEM((Bp, Hp), jnp.float32),            # h state
                pltpu.VMEM((Bp, Hp), jnp.float32),            # c state
                pltpu.VMEM((Bp, Hp), jnp.float32),            # running max
            ],
        ),
        compiler_params=pltpu.CompilerParams(
            dimension_semantics=("parallel", "arbitrary"),
            vmem_limit_bytes=_vmem_limit_bytes(ts, Bp, Dp, Hp, wbytes)),
    )(lenv, x_both, packed["wih"], packed["b"], packed["whh"])

    # Un-pad and concatenate the two directions (PyTorch bi-LSTM output layout).
    return jnp.concatenate([out[0, :B, :H], out[1, :B, :H]], axis=-1)


# ----------------------------------------------------------------------------
# Parameters: PyTorch nn.LSTM layout + default init U(-1/sqrt(H), 1/sqrt(H)),
# then packed / zero-padded into tile-aligned kernel layout.
# ----------------------------------------------------------------------------
def init_params(key, word_emb_dim, enc_lstm_dim):
    D, H = word_emb_dim, enc_lstm_dim
    k = 1.0 / np.sqrt(H)
    ks = jax.random.split(key, 8)
    u = lambda kk, shape: jax.random.uniform(kk, shape, jnp.float32, -k, k)
    # PyTorch shapes: weight_ih_l0 (4H, D), weight_hh_l0 (4H, H), biases (4H,)
    return {
        "w_ih_f": u(ks[0], (4 * H, D)), "w_hh_f": u(ks[1], (4 * H, H)),
        "b_ih_f": u(ks[2], (4 * H,)),   "b_hh_f": u(ks[3], (4 * H,)),
        "w_ih_b": u(ks[4], (4 * H, D)), "w_hh_b": u(ks[5], (4 * H, H)),
        "b_ih_b": u(ks[6], (4 * H,)),   "b_hh_b": u(ks[7], (4 * H,)),
    }


def pack_params(raw, word_emb_dim, enc_lstm_dim, *, weight_dtype=jnp.float32):
    """Transpose to (in, 4H) layout, zero-pad each gate block to Hp lanes and
    stack the two directions on a leading axis.  Padded gate columns have zero
    weight and bias, so padded hidden units stay exactly 0.  `weight_dtype`
    (f32 or bf16) is the MXU streaming dtype; accumulation is always f32."""
    D, H = word_emb_dim, enc_lstm_dim
    Dp = _round_up(D, 128)
    Hp = _round_up(H, 128)

    def pack_dir(w_ih, w_hh, b_ih, b_hh):
        w_ih = np.asarray(w_ih)
        w_hh = np.asarray(w_hh)
        b = np.asarray(b_ih) + np.asarray(b_hh)
        wih_p = np.zeros((Dp, 4 * Hp), np.float32)
        whh_p = np.zeros((Hp, 4 * Hp), np.float32)
        b_p = np.zeros((1, 4 * Hp), np.float32)
        for g in range(4):                      # PyTorch gate order i, f, g, o
            wih_p[:D, g * Hp:g * Hp + H] = w_ih[g * H:(g + 1) * H, :].T
            whh_p[:H, g * Hp:g * Hp + H] = w_hh[g * H:(g + 1) * H, :].T
            b_p[0, g * Hp:g * Hp + H] = b[g * H:(g + 1) * H]
        return wih_p, whh_p, b_p

    wf, hf, bf = pack_dir(raw["w_ih_f"], raw["w_hh_f"], raw["b_ih_f"], raw["b_hh_f"])
    wb, hb, bb = pack_dir(raw["w_ih_b"], raw["w_hh_b"], raw["b_ih_b"], raw["b_hh_b"])
    return {
        "wih": jnp.asarray(np.stack([wf, wb]), weight_dtype),   # (2, Dp, 4Hp)
        "whh": jnp.asarray(np.stack([hf, hb]), weight_dtype),   # (2, Hp, 4Hp)
        "b":   jnp.asarray(np.stack([bf, bb]), jnp.float32),    # (2, 1, 4Hp)
        "H": H, "Hp": Hp, "Dp": Dp,
    }


# ----------------------------------------------------------------------------
# Pure-JAX reference (PyTorch packed bi-LSTM + max-pool semantics).
# ----------------------------------------------------------------------------
def reference_forward(sent, sent_len, raw):
    T, B, D = sent.shape
    H = raw["w_hh_f"].shape[1]
    mask = (jnp.arange(T)[:, None] < sent_len[None, :]).astype(jnp.float32)[:, :, None]

    def run(w_ih, w_hh, b_ih, b_hh, xs, ms):
        wih, whh, b = w_ih.T, w_hh.T, (b_ih + b_hh)[None, :]

        def cell(carry, inp):
            h, c = carry
            xt, mt = inp
            g = xt @ wih + h @ whh + b
            i = jax.nn.sigmoid(g[:, :H])
            f = jax.nn.sigmoid(g[:, H:2 * H])
            gg = jnp.tanh(g[:, 2 * H:3 * H])
            o = jax.nn.sigmoid(g[:, 3 * H:])
            cn = f * c + i * gg
            hn = o * jnp.tanh(cn)
            return (mt * hn + (1 - mt) * h, mt * cn + (1 - mt) * c), mt * hn

        init = (jnp.zeros((B, H), jnp.float32), jnp.zeros((B, H), jnp.float32))
        _, outs = jax.lax.scan(cell, init, (xs, ms))
        return outs

    out_f = run(raw["w_ih_f"], raw["w_hh_f"], raw["b_ih_f"], raw["b_hh_f"],
                sent, mask)
    out_b = run(raw["w_ih_b"], raw["w_hh_b"], raw["b_ih_b"], raw["b_hh_b"],
                sent[::-1], mask[::-1])
    out = jnp.concatenate([out_f, out_b[::-1]], axis=-1)   # (T, B, 2H), 0-padded
    return jnp.max(out, axis=0)


if __name__ == "__main__":
    config = {"bsize": 3, "word_emb_dim": 32, "enc_lstm_dim": 32,
              "pool_type": "max", "dpout_model": 0.0}
    T, B = 10, config["bsize"]

    key = jax.random.PRNGKey(0)
    kp, kx = jax.random.split(key)
    raw = init_params(kp, config["word_emb_dim"], config["enc_lstm_dim"])

    sent = jax.random.normal(kx, (T, B, config["word_emb_dim"]), jnp.float32)
    # Variable lengths; T not a multiple of ts and B not a multiple of 8 so the
    # time- and batch-padding / masking paths are actually exercised.
    sent_len = jnp.array([10, 7, 4], dtype=jnp.int32)

    ref = jax.block_until_ready(reference_forward(sent, sent_len, raw))

    # f32 weights: strict check against the reference.
    packed_f32 = pack_params(raw, config["word_emb_dim"], config["enc_lstm_dim"],
                             weight_dtype=jnp.float32)
    emb = jax.block_until_ready(
        blstm_encoder_forward(sent, sent_len, packed_f32, ts=4))
    assert emb.shape == (B, 2 * config["enc_lstm_dim"])
    np.testing.assert_allclose(np.asarray(emb), np.asarray(ref),
                               rtol=1e-4, atol=1e-4)

    # bf16 weights/activations (production bandwidth path): loose check.
    packed_bf16 = pack_params(raw, config["word_emb_dim"], config["enc_lstm_dim"],
                              weight_dtype=jnp.bfloat16)
    emb16 = jax.block_until_ready(
        blstm_encoder_forward(sent, sent_len, packed_bf16, ts=4))
    np.testing.assert_allclose(np.asarray(emb16), np.asarray(ref),
                               rtol=5e-2, atol=5e-2)

    print("KERNEL_OK")
</pallas_src>

<mosaic_0001>
module attributes {stable_mosaic.version = 11 : i64} {
  func.func @kernel(%arg0: i32, %arg1: i32, %arg2: memref<8x1xi32, #tpu.memory_space<vmem>>, %arg3: memref<1x1x32x128xf32, #tpu.memory_space<vmem>>, %arg4: memref<1x128x512xf32, #tpu.memory_space<vmem>>, %arg5: memref<1x1x512xf32, #tpu.memory_space<vmem>>, %arg6: memref<1x128x512xf32, #tpu.memory_space<vmem>>, %arg7: memref<1x8x128xf32, #tpu.memory_space<vmem>>, %arg8: memref<32x512xf32, #tpu.memory_space<vmem>>, %arg9: memref<8x128xf32, #tpu.memory_space<vmem>>, %arg10: memref<8x128xf32, #tpu.memory_space<vmem>>, %arg11: memref<8x128xf32, #tpu.memory_space<vmem>>) attributes {dimension_semantics = [#tpu.dimension_semantics<parallel>, #tpu.dimension_semantics<arbitrary>], iteration_bounds = array<i64: 2, 3>, scalar_prefetch = 0 : i64, scratch_operands = 4 : i64, tpu.core_type = #tpu.core_type<tc>, window_params = [{pipeline_mode = #tpu.pipeline_mode<synchronous>, transform_indices = @transform_0, window_bounds = array<i64: 8, 1>}, {transform_indices = @transform_1, window_bounds = array<i64: 1, 1, 32, 128>}, {transform_indices = @transform_2, window_bounds = array<i64: 1, 128, 512>}, {transform_indices = @transform_3, window_bounds = array<i64: 1, 1, 512>}, {transform_indices = @transform_4, window_bounds = array<i64: 1, 128, 512>}, {transform_indices = @transform_5, window_bounds = array<i64: 1, 8, 128>}]} {
    %c0_i32 = arith.constant 0 : i32
    %0 = arith.cmpi eq, %arg1, %c0_i32 : i32
    %1 = arith.extui %0 : i1 to i32
    %c0_i32_0 = arith.constant 0 : i32
    %2 = arith.cmpi ne, %1, %c0_i32_0 : i32
    scf.if %2 {
      %cst_77 = arith.constant 0.000000e+00 : f32
      %229 = vector.broadcast %cst_77 : f32 to vector<8x128xf32>
      %c0_78 = arith.constant 0 : index
      %c0_79 = arith.constant 0 : index
      %230 = vector.load %arg9[%c0_78, %c0_79] : memref<8x128xf32, #tpu.memory_space<vmem>>, vector<8x128xf32>
      tpu.vector_store %arg9[%c0_78, %c0_79], %229 {strides = array<i32>} : memref<8x128xf32, #tpu.memory_space<vmem>>, vector<8x128xf32>,
      %cst_80 = arith.constant 0.000000e+00 : f32
      %231 = vector.broadcast %cst_80 : f32 to vector<8x128xf32>
      %c0_81 = arith.constant 0 : index
      %c0_82 = arith.constant 0 : index
      %232 = vector.load %arg10[%c0_81, %c0_82] : memref<8x128xf32, #tpu.memory_space<vmem>>, vector<8x128xf32>
      tpu.vector_store %arg10[%c0_81, %c0_82], %231 {strides = array<i32>} : memref<8x128xf32, #tpu.memory_space<vmem>>, vector<8x128xf32>,
      %cst_83 = arith.constant 0xFF800000 : f32
      %233 = vector.broadcast %cst_83 : f32 to vector<8x128xf32>
      %c0_84 = arith.constant 0 : index
      %c0_85 = arith.constant 0 : index
      %234 = vector.load %arg11[%c0_84, %c0_85] : memref<8x128xf32, #tpu.memory_space<vmem>>, vector<8x128xf32>
      tpu.vector_store %arg11[%c0_84, %c0_85], %233 {strides = array<i32>} : memref<8x128xf32, #tpu.memory_space<vmem>>, vector<8x128xf32>,
    } else {
    }
    %c0 = arith.constant 0 : index
    %c0_1 = arith.constant 0 : index
    %c0_2 = arith.constant 0 : index
    %c0_3 = arith.constant 0 : index
    %3 = vector.load %arg3[%c0, %c0_1, %c0_2, %c0_3] : memref<1x1x32x128xf32, #tpu.memory_space<vmem>>, vector<1x1x32x128xf32>
    %4 = vector.shape_cast %3 : vector<1x1x32x128xf32> to vector<32x128xf32>
    %c0_4 = arith.constant 0 : index
    %c0_5 = arith.constant 0 : index
    %c0_6 = arith.constant 0 : index
    %5 = vector.load %arg4[%c0_4, %c0_5, %c0_6] : memref<1x128x512xf32, #tpu.memory_space<vmem>>, vector<1x128x512xf32>
    %6 = vector.shape_cast %5 : vector<1x128x512xf32> to vector<128x512xf32>
    %cst = arith.constant dense<0.000000e+00> : vector<32x512xf32>
    %7 = tpu.matmul %4, %6, %cst {dimension_numbers = #tpu.dot_dimension_numbers<[1], [0], [0], [1], [0, 0, 1, 1], [], []>} : vector<32x128xf32>, vector<128x512xf32>, vector<32x512xf32> -> vector<32x512xf32>
    %c0_7 = arith.constant 0 : index
    %c0_8 = arith.constant 0 : index
    %c0_9 = arith.constant 0 : index
    %8 = vector.load %arg5[%c0_7, %c0_8, %c0_9] : memref<1x1x512xf32, #tpu.memory_space<vmem>>, vector<1x1x512xf32>
    %9 = vector.shape_cast %8 : vector<1x1x512xf32> to vector<1x512xf32>
    %10 = vector.broadcast %9 : vector<1x512xf32> to vector<32x512xf32>
    %11 = arith.addf %7, %10 : vector<32x512xf32>
    %c0_10 = arith.constant 0 : index
    %c0_11 = arith.constant 0 : index
    %12 = vector.load %arg8[%c0_10, %c0_11] : memref<32x512xf32, #tpu.memory_space<vmem>>, vector<32x512xf32>
    tpu.vector_store %arg8[%c0_10, %c0_11], %11 {strides = array<i32>} : memref<32x512xf32, #tpu.memory_space<vmem>>, vector<32x512xf32>,
    %c0_12 = arith.constant 0 : index
    %c0_13 = arith.constant 0 : index
    %13 = vector.load %arg2[%c0_12, %c0_13] : memref<8x1xi32, #tpu.memory_space<vmem>>, vector<8x1xi32>
    %c0_14 = arith.constant 0 : index
    %c0_15 = arith.constant 0 : index
    %c0_16 = arith.constant 0 : index
    %14 = vector.load %arg6[%c0_14, %c0_15, %c0_16] : memref<1x128x512xf32, #tpu.memory_space<vmem>>, vector<1x128x512xf32>
    %15 = vector.shape_cast %14 : vector<1x128x512xf32> to vector<128x512xf32>
    %c0_17 = arith.constant 0 : index
    %c0_18 = arith.constant 0 : index
    %16 = vector.load %arg9[%c0_17, %c0_18] : memref<8x128xf32, #tpu.memory_space<vmem>>, vector<8x128xf32>
    %c0_19 = arith.constant 0 : index
    %c0_20 = arith.constant 0 : index
    %17 = vector.load %arg10[%c0_19, %c0_20] : memref<8x128xf32, #tpu.memory_space<vmem>>, vector<8x128xf32>
    %c0_21 = arith.constant 0 : index
    %c0_22 = arith.constant 0 : index
    %18 = vector.load %arg11[%c0_21, %c0_22] : memref<8x128xf32, #tpu.memory_space<vmem>>, vector<8x128xf32>
    %c0_i32_23 = arith.constant 0 : i32
    %c8_i32 = arith.constant 8 : i32
    %19 = arith.muli %c0_i32_23, %c8_i32 : i32
    %20 = tpu.assume_multiple %19, 8 : i32
    %21 = arith.index_cast %20 : i32 to index
    %c0_24 = arith.constant 0 : index
    %22 = vector.load %arg8[%21, %c0_24] : memref<32x512xf32, #tpu.memory_space<vmem>>, vector<8x512xf32>
    %cst_25 = arith.constant dense<0.000000e+00> : vector<8x512xf32>
    %23 = tpu.matmul %16, %15, %cst_25 {dimension_numbers = #tpu.dot_dimension_numbers<[1], [0], [0], [1], [0, 0, 1, 1], [], []>} : vector<8x128xf32>, vector<128x512xf32>, vector<8x512xf32> -> vector<8x512xf32>
    %24 = arith.addf %22, %23 : vector<8x512xf32>
    %25 = vector.extract_strided_slice %24 {offsets = [0, 0], sizes = [8, 128], strides = [1, 1]} : vector<8x512xf32> to vector<8x128xf32>
    %26 = arith.negf %25 : vector<8x128xf32>
    %27 = math.exp %26 : vector<8x128xf32>
    %cst_26 = arith.constant 1.000000e+00 : f32
    %28 = vector.broadcast %cst_26 : f32 to vector<8x128xf32>
    %29 = arith.addf %28, %27 : vector<8x128xf32>
    %30 = arith.divf %28, %29 : vector<8x128xf32>
    %31 = vector.extract_strided_slice %24 {offsets = [0, 128], sizes = [8, 128], strides = [1, 1]} : vector<8x512xf32> to vector<8x128xf32>
    %32 = arith.negf %31 : vector<8x128xf32>
    %33 = math.exp %32 : vector<8x128xf32>
    %cst_27 = arith.constant 1.000000e+00 : f32
    %34 = vector.broadcast %cst_27 : f32 to vector<8x128xf32>
    %35 = arith.addf %34, %33 : vector<8x128xf32>
    %36 = arith.divf %34, %35 : vector<8x128xf32>
    %37 = vector.extract_strided_slice %24 {offsets = [0, 256], sizes = [8, 128], strides = [1, 1]} : vector<8x512xf32> to vector<8x128xf32>
    %38 = math.tanh %37 : vector<8x128xf32>
    %39 = vector.extract_strided_slice %24 {offsets = [0, 384], sizes = [8, 128], strides = [1, 1]} : vector<8x512xf32> to vector<8x128xf32>
    %40 = arith.negf %39 : vector<8x128xf32>
    %41 = math.exp %40 : vector<8x128xf32>
    %cst_28 = arith.constant 1.000000e+00 : f32
    %42 = vector.broadcast %cst_28 : f32 to vector<8x128xf32>
    %43 = arith.addf %42, %41 : vector<8x128xf32>
    %44 = arith.divf %42, %43 : vector<8x128xf32>
    %45 = arith.mulf %36, %17 : vector<8x128xf32>
    %46 = arith.mulf %30, %38 : vector<8x128xf32>
    %47 = arith.addf %45, %46 : vector<8x128xf32>
    %48 = math.tanh %47 : vector<8x128xf32>
    %49 = arith.mulf %44, %48 : vector<8x128xf32>
    %c4_i32 = arith.constant 4 : i32
    %50 = arith.muli %arg1, %c4_i32 : i32
    %51 = arith.addi %50, %c0_i32_23 : i32
    %c0_i32_29 = arith.constant 0 : i32
    %52 = arith.cmpi eq, %arg0, %c0_i32_29 : i32
    %c11_i32 = arith.constant 11 : i32
    %53 = arith.subi %c11_i32, %51 : i32
    %54 = arith.select %52, %51, %53 : i32
    %55 = vector.broadcast %54 : i32 to vector<8x1xi32>
    %56 = arith.cmpi sgt, %13, %55 : vector<8x1xi32>
    %57 = vector.shape_cast %56 : vector<8x1xi1> to vector<8x1xi1>
    %58 = vector.broadcast %57 : vector<8x1xi1> to vector<8x128xi1>
    %59 = arith.select %58, %49, %16 : vector<8x128xi1>, vector<8x128xf32>
    %60 = vector.shape_cast %56 : vector<8x1xi1> to vector<8x1xi1>
    %61 = vector.broadcast %60 : vector<8x1xi1> to vector<8x128xi1>
    %62 = arith.select %61, %47, %17 : vector<8x128xi1>, vector<8x128xf32>
    %c10_i32 = arith.constant 10 : i32
    %63 = arith.cmpi slt, %54, %c10_i32 : i32
    %cst_30 = arith.constant 0.000000e+00 : f32
    %cst_31 = arith.constant 0xFF800000 : f32
    %64 = arith.select %63, %cst_30, %cst_31 : f32
    %65 = vector.shape_cast %56 : vector<8x1xi1> to vector<8x1xi1>
    %66 = vector.broadcast %65 : vector<8x1xi1> to vector<8x128xi1>
    %67 = vector.broadcast %64 : f32 to vector<8x128xf32>
    %68 = arith.select %66, %49, %67 : vector<8x128xi1>, vector<8x128xf32>
    %69 = arith.maximumf %18, %68 : vector<8x128xf32>
    %c1_i32 = arith.constant 1 : i32
    %c8_i32_32 = arith.constant 8 : i32
    %70 = arith.muli %c1_i32, %c8_i32_32 : i32
    %71 = tpu.assume_multiple %70, 8 : i32
    %72 = arith.index_cast %71 : i32 to index
    %c0_33 = arith.constant 0 : index
    %73 = vector.load %arg8[%72, %c0_33] : memref<32x512xf32, #tpu.memory_space<vmem>>, vector<8x512xf32>
    %cst_34 = arith.constant dense<0.000000e+00> : vector<8x512xf32>
    %74 = tpu.matmul %59, %15, %cst_34 {dimension_numbers = #tpu.dot_dimension_numbers<[1], [0], [0], [1], [0, 0, 1, 1], [], []>} : vector<8x128xf32>, vector<128x512xf32>, vector<8x512xf32> -> vector<8x512xf32>
    %75 = arith.addf %73, %74 : vector<8x512xf32>
    %76 = vector.extract_strided_slice %75 {offsets = [0, 0], sizes = [8, 128], strides = [1, 1]} : vector<8x512xf32> to vector<8x128xf32>
    %77 = arith.negf %76 : vector<8x128xf32>
    %78 = math.exp %77 : vector<8x128xf32>
    %cst_35 = arith.constant 1.000000e+00 : f32
    %79 = vector.broadcast %cst_35 : f32 to vector<8x128xf32>
    %80 = arith.addf %79, %78 : vector<8x128xf32>
    %81 = arith.divf %79, %80 : vector<8x128xf32>
    %82 = vector.extract_strided_slice %75 {offsets = [0, 128], sizes = [8, 128], strides = [1, 1]} : vector<8x512xf32> to vector<8x128xf32>
    %83 = arith.negf %82 : vector<8x128xf32>
    %84 = math.exp %83 : vector<8x128xf32>
    %cst_36 = arith.constant 1.000000e+00 : f32
    %85 = vector.broadcast %cst_36 : f32 to vector<8x128xf32>
    %86 = arith.addf %85, %84 : vector<8x128xf32>
    %87 = arith.divf %85, %86 : vector<8x128xf32>
    %88 = vector.extract_strided_slice %75 {offsets = [0, 256], sizes = [8, 128], strides = [1, 1]} : vector<8x512xf32> to vector<8x128xf32>
    %89 = math.tanh %88 : vector<8x128xf32>
    %90 = vector.extract_strided_slice %75 {offsets = [0, 384], sizes = [8, 128], strides = [1, 1]} : vector<8x512xf32> to vector<8x128xf32>
    %91 = arith.negf %90 : vector<8x128xf32>
    %92 = math.exp %91 : vector<8x128xf32>
    %cst_37 = arith.constant 1.000000e+00 : f32
    %93 = vector.broadcast %cst_37 : f32 to vector<8x128xf32>
    %94 = arith.addf %93, %92 : vector<8x128xf32>
    %95 = arith.divf %93, %94 : vector<8x128xf32>
    %96 = arith.mulf %87, %62 : vector<8x128xf32>
    %97 = arith.mulf %81, %89 : vector<8x128xf32>
    %98 = arith.addf %96, %97 : vector<8x128xf32>
    %99 = math.tanh %98 : vector<8x128xf32>
    %100 = arith.mulf %95, %99 : vector<8x128xf32>
    %c4_i32_38 = arith.constant 4 : i32
    %101 = arith.muli %arg1, %c4_i32_38 : i32
    %102 = arith.addi %101, %c1_i32 : i32
    %c0_i32_39 = arith.constant 0 : i32
    %103 = arith.cmpi eq, %arg0, %c0_i32_39 : i32
    %c11_i32_40 = arith.constant 11 : i32
    %104 = arith.subi %c11_i32_40, %102 : i32
    %105 = arith.select %103, %102, %104 : i32
    %106 = vector.broadcast %105 : i32 to vector<8x1xi32>
    %107 = arith.cmpi sgt, %13, %106 : vector<8x1xi32>
    %108 = vector.shape_cast %107 : vector<8x1xi1> to vector<8x1xi1>
    %109 = vector.broadcast %108 : vector<8x1xi1> to vector<8x128xi1>
    %110 = arith.select %109, %100, %59 : vector<8x128xi1>, vector<8x128xf32>
    %111 = vector.shape_cast %107 : vector<8x1xi1> to vector<8x1xi1>
    %112 = vector.broadcast %111 : vector<8x1xi1> to vector<8x128xi1>
    %113 = arith.select %112, %98, %62 : vector<8x128xi1>, vector<8x128xf32>
    %c10_i32_41 = arith.constant 10 : i32
    %114 = arith.cmpi slt, %105, %c10_i32_41 : i32
    %cst_42 = arith.constant 0.000000e+00 : f32
    %cst_43 = arith.constant 0xFF800000 : f32
    %115 = arith.select %114, %cst_42, %cst_43 : f32
    %116 = vector.shape_cast %107 : vector<8x1xi1> to vector<8x1xi1>
    %117 = vector.broadcast %116 : vector<8x1xi1> to vector<8x128xi1>
    %118 = vector.broadcast %115 : f32 to vector<8x128xf32>
    %119 = arith.select %117, %100, %118 : vector<8x128xi1>, vector<8x128xf32>
    %120 = arith.maximumf %69, %119 : vector<8x128xf32>
    %c2_i32 = arith.constant 2 : i32
    %c8_i32_44 = arith.constant 8 : i32
    %121 = arith.muli %c2_i32, %c8_i32_44 : i32
    %122 = tpu.assume_multiple %121, 8 : i32
    %123 = arith.index_cast %122 : i32 to index
    %c0_45 = arith.constant 0 : index
    %124 = vector.load %arg8[%123, %c0_45] : memref<32x512xf32, #tpu.memory_space<vmem>>, vector<8x512xf32>
    %cst_46 = arith.constant dense<0.000000e+00> : vector<8x512xf32>
    %125 = tpu.matmul %110, %15, %cst_46 {dimension_numbers = #tpu.dot_dimension_numbers<[1], [0], [0], [1], [0, 0, 1, 1], [], []>} : vector<8x128xf32>, vector<128x512xf32>, vector<8x512xf32> -> vector<8x512xf32>
    %126 = arith.addf %124, %125 : vector<8x512xf32>
    %127 = vector.extract_strided_slice %126 {offsets = [0, 0], sizes = [8, 128], strides = [1, 1]} : vector<8x512xf32> to vector<8x128xf32>
    %128 = arith.negf %127 : vector<8x128xf32>
    %129 = math.exp %128 : vector<8x128xf32>
    %cst_47 = arith.constant 1.000000e+00 : f32
    %130 = vector.broadcast %cst_47 : f32 to vector<8x128xf32>
    %131 = arith.addf %130, %129 : vector<8x128xf32>
    %132 = arith.divf %130, %131 : vector<8x128xf32>
    %133 = vector.extract_strided_slice %126 {offsets = [0, 128], sizes = [8, 128], strides = [1, 1]} : vector<8x512xf32> to vector<8x128xf32>
    %134 = arith.negf %133 : vector<8x128xf32>
    %135 = math.exp %134 : vector<8x128xf32>
    %cst_48 = arith.constant 1.000000e+00 : f32
    %136 = vector.broadcast %cst_48 : f32 to vector<8x128xf32>
    %137 = arith.addf %136, %135 : vector<8x128xf32>
    %138 = arith.divf %136, %137 : vector<8x128xf32>
    %139 = vector.extract_strided_slice %126 {offsets = [0, 256], sizes = [8, 128], strides = [1, 1]} : vector<8x512xf32> to vector<8x128xf32>
    %140 = math.tanh %139 : vector<8x128xf32>
    %141 = vector.extract_strided_slice %126 {offsets = [0, 384], sizes = [8, 128], strides = [1, 1]} : vector<8x512xf32> to vector<8x128xf32>
    %142 = arith.negf %141 : vector<8x128xf32>
    %143 = math.exp %142 : vector<8x128xf32>
    %cst_49 = arith.constant 1.000000e+00 : f32
    %144 = vector.broadcast %cst_49 : f32 to vector<8x128xf32>
    %145 = arith.addf %144, %143 : vector<8x128xf32>
    %146 = arith.divf %144, %145 : vector<8x128xf32>
    %147 = arith.mulf %138, %113 : vector<8x128xf32>
    %148 = arith.mulf %132, %140 : vector<8x128xf32>
    %149 = arith.addf %147, %148 : vector<8x128xf32>
    %150 = math.tanh %149 : vector<8x128xf32>
    %151 = arith.mulf %146, %150 : vector<8x128xf32>
    %c4_i32_50 = arith.constant 4 : i32
    %152 = arith.muli %arg1, %c4_i32_50 : i32
    %153 = arith.addi %152, %c2_i32 : i32
    %c0_i32_51 = arith.constant 0 : i32
    %154 = arith.cmpi eq, %arg0, %c0_i32_51 : i32
    %c11_i32_52 = arith.constant 11 : i32
    %155 = arith.subi %c11_i32_52, %153 : i32
    %156 = arith.select %154, %153, %155 : i32
    %157 = vector.broadcast %156 : i32 to vector<8x1xi32>
    %158 = arith.cmpi sgt, %13, %157 : vector<8x1xi32>
    %159 = vector.shape_cast %158 : vector<8x1xi1> to vector<8x1xi1>
    %160 = vector.broadcast %159 : vector<8x1xi1> to vector<8x128xi1>
    %161 = arith.select %160, %151, %110 : vector<8x128xi1>, vector<8x128xf32>
    %162 = vector.shape_cast %158 : vector<8x1xi1> to vector<8x1xi1>
    %163 = vector.broadcast %162 : vector<8x1xi1> to vector<8x128xi1>
    %164 = arith.select %163, %149, %113 : vector<8x128xi1>, vector<8x128xf32>
    %c10_i32_53 = arith.constant 10 : i32
    %165 = arith.cmpi slt, %156, %c10_i32_53 : i32
    %cst_54 = arith.constant 0.000000e+00 : f32
    %cst_55 = arith.constant 0xFF800000 : f32
    %166 = arith.select %165, %cst_54, %cst_55 : f32
    %167 = vector.shape_cast %158 : vector<8x1xi1> to vector<8x1xi1>
    %168 = vector.broadcast %167 : vector<8x1xi1> to vector<8x128xi1>
    %169 = vector.broadcast %166 : f32 to vector<8x128xf32>
    %170 = arith.select %168, %151, %169 : vector<8x128xi1>, vector<8x128xf32>
    %171 = arith.maximumf %120, %170 : vector<8x128xf32>
    %c3_i32 = arith.constant 3 : i32
    %c8_i32_56 = arith.constant 8 : i32
    %172 = arith.muli %c3_i32, %c8_i32_56 : i32
    %173 = tpu.assume_multiple %172, 8 : i32
    %174 = arith.index_cast %173 : i32 to index
    %c0_57 = arith.constant 0 : index
    %175 = vector.load %arg8[%174, %c0_57] : memref<32x512xf32, #tpu.memory_space<vmem>>, vector<8x512xf32>
    %cst_58 = arith.constant dense<0.000000e+00> : vector<8x512xf32>
    %176 = tpu.matmul %161, %15, %cst_58 {dimension_numbers = #tpu.dot_dimension_numbers<[1], [0], [0], [1], [0, 0, 1, 1], [], []>} : vector<8x128xf32>, vector<128x512xf32>, vector<8x512xf32> -> vector<8x512xf32>
    %177 = arith.addf %175, %176 : vector<8x512xf32>
    %178 = vector.extract_strided_slice %177 {offsets = [0, 0], sizes = [8, 128], strides = [1, 1]} : vector<8x512xf32> to vector<8x128xf32>
    %179 = arith.negf %178 : vector<8x128xf32>
    %180 = math.exp %179 : vector<8x128xf32>
    %cst_59 = arith.constant 1.000000e+00 : f32
    %181 = vector.broadcast %cst_59 : f32 to vector<8x128xf32>
    %182 = arith.addf %181, %180 : vector<8x128xf32>
    %183 = arith.divf %181, %182 : vector<8x128xf32>
    %184 = vector.extract_strided_slice %177 {offsets = [0, 128], sizes = [8, 128], strides = [1, 1]} : vector<8x512xf32> to vector<8x128xf32>
    %185 = arith.negf %184 : vector<8x128xf32>
    %186 = math.exp %185 : vector<8x128xf32>
    %cst_60 = arith.constant 1.000000e+00 : f32
    %187 = vector.broadcast %cst_60 : f32 to vector<8x128xf32>
    %188 = arith.addf %187, %186 : vector<8x128xf32>
    %189 = arith.divf %187, %188 : vector<8x128xf32>
    %190 = vector.extract_strided_slice %177 {offsets = [0, 256], sizes = [8, 128], strides = [1, 1]} : vector<8x512xf32> to vector<8x128xf32>
    %191 = math.tanh %190 : vector<8x128xf32>
    %192 = vector.extract_strided_slice %177 {offsets = [0, 384], sizes = [8, 128], strides = [1, 1]} : vector<8x512xf32> to vector<8x128xf32>
    %193 = arith.negf %192 : vector<8x128xf32>
    %194 = math.exp %193 : vector<8x128xf32>
    %cst_61 = arith.constant 1.000000e+00 : f32
    %195 = vector.broadcast %cst_61 : f32 to vector<8x128xf32>
    %196 = arith.addf %195, %194 : vector<8x128xf32>
    %197 = arith.divf %195, %196 : vector<8x128xf32>
    %198 = arith.mulf %189, %164 : vector<8x128xf32>
    %199 = arith.mulf %183, %191 : vector<8x128xf32>
    %200 = arith.addf %198, %199 : vector<8x128xf32>
    %201 = math.tanh %200 : vector<8x128xf32>
    %202 = arith.mulf %197, %201 : vector<8x128xf32>
    %c4_i32_62 = arith.constant 4 : i32
    %203 = arith.muli %arg1, %c4_i32_62 : i32
    %204 = arith.addi %203, %c3_i32 : i32
    %c0_i32_63 = arith.constant 0 : i32
    %205 = arith.cmpi eq, %arg0, %c0_i32_63 : i32
    %c11_i32_64 = arith.constant 11 : i32
    %206 = arith.subi %c11_i32_64, %204 : i32
    %207 = arith.select %205, %204, %206 : i32
    %208 = vector.broadcast %207 : i32 to vector<8x1xi32>
    %209 = arith.cmpi sgt, %13, %208 : vector<8x1xi32>
    %210 = vector.shape_cast %209 : vector<8x1xi1> to vector<8x1xi1>
    %211 = vector.broadcast %210 : vector<8x1xi1> to vector<8x128xi1>
    %212 = arith.select %211, %202, %161 : vector<8x128xi1>, vector<8x128xf32>
    %213 = vector.shape_cast %209 : vector<8x1xi1> to vector<8x1xi1>
    %214 = vector.broadcast %213 : vector<8x1xi1> to vector<8x128xi1>
    %215 = arith.select %214, %200, %164 : vector<8x128xi1>, vector<8x128xf32>
    %c10_i32_65 = arith.constant 10 : i32
    %216 = arith.cmpi slt, %207, %c10_i32_65 : i32
    %cst_66 = arith.constant 0.000000e+00 : f32
    %cst_67 = arith.constant 0xFF800000 : f32
    %217 = arith.select %216, %cst_66, %cst_67 : f32
    %218 = vector.shape_cast %209 : vector<8x1xi1> to vector<8x1xi1>
    %219 = vector.broadcast %218 : vector<8x1xi1> to vector<8x128xi1>
    %220 = vector.broadcast %217 : f32 to vector<8x128xf32>
    %221 = arith.select %219, %202, %220 : vector<8x128xi1>, vector<8x128xf32>
    %222 = arith.maximumf %171, %221 : vector<8x128xf32>
    %c4_i32_68 = arith.constant 4 : i32
    %c0_69 = arith.constant 0 : index
    %c0_70 = arith.constant 0 : index
    %223 = vector.load %arg9[%c0_69, %c0_70] : memref<8x128xf32, #tpu.memory_space<vmem>>, vector<8x128xf32>
    tpu.vector_store %arg9[%c0_69, %c0_70], %212 {strides = array<i32>} : memref<8x128xf32, #tpu.memory_space<vmem>>, vector<8x128xf32>,
    %c0_71 = arith.constant 0 : index
    %c0_72 = arith.constant 0 : index
    %224 = vector.load %arg10[%c0_71, %c0_72] : memref<8x128xf32, #tpu.memory_space<vmem>>, vector<8x128xf32>
    tpu.vector_store %arg10[%c0_71, %c0_72], %215 {strides = array<i32>} : memref<8x128xf32, #tpu.memory_space<vmem>>, vector<8x128xf32>,
    %c0_73 = arith.constant 0 : index
    %c0_74 = arith.constant 0 : index
    %225 = vector.load %arg11[%c0_73, %c0_74] : memref<8x128xf32, #tpu.memory_space<vmem>>, vector<8x128xf32>
    tpu.vector_store %arg11[%c0_73, %c0_74], %222 {strides = array<i32>} : memref<8x128xf32, #tpu.memory_space<vmem>>, vector<8x128xf32>,
    %c2_i32_75 = arith.constant 2 : i32
    %226 = arith.cmpi eq, %arg1, %c2_i32_75 : i32
    %227 = arith.extui %226 : i1 to i32
    %c0_i32_76 = arith.constant 0 : i32
    %228 = arith.cmpi ne, %227, %c0_i32_76 : i32
    scf.if %228 {
      %c0_77 = arith.constant 0 : index
      %c0_78 = arith.constant 0 : index
      %c0_79 = arith.constant 0 : index
      %229 = vector.load %arg7[%c0_77, %c0_78, %c0_79] : memref<1x8x128xf32, #tpu.memory_space<vmem>>, vector<1x8x128xf32>
      %230 = vector.shape_cast %229 : vector<1x8x128xf32> to vector<8x128xf32>
      %231 = vector.shape_cast %222 : vector<8x128xf32> to vector<1x8x128xf32>
      tpu.vector_store %arg7[%c0_77, %c0_78, %c0_79], %231 {strides = array<i32>} : memref<1x8x128xf32, #tpu.memory_space<vmem>>, vector<1x8x128xf32>,
    } else {
    }
    return
  }
  func.func @transform_0(%arg0: i32, %arg1: i32) -> (i32, i32) {
    %c0_i32 = arith.constant 0 : i32
    %c0_i32_0 = arith.constant 0 : i32
    %c0_i32_1 = arith.constant 0 : i32
    return %c0_i32, %c0_i32_0 : i32, i32
  }
  func.func @transform_1(%arg0: i32, %arg1: i32) -> (i32, i32, i32, i32) {
    %c0_i32 = arith.constant 0 : i32
    %c0_i32_0 = arith.constant 0 : i32
    %c0_i32_1 = arith.constant 0 : i32
    return %arg0, %arg1, %c0_i32, %c0_i32_0 : i32, i32, i32, i32
  }
  func.func @transform_2(%arg0: i32, %arg1: i32) -> (i32, i32, i32) {
    %c0_i32 = arith.constant 0 : i32
    %c0_i32_0 = arith.constant 0 : i32
    %c0_i32_1 = arith.constant 0 : i32
    return %arg0, %c0_i32, %c0_i32_0 : i32, i32, i32
  }
  func.func @transform_3(%arg0: i32, %arg1: i32) -> (i32, i32, i32) {
    %c0_i32 = arith.constant 0 : i32
    %c0_i32_0 = arith.constant 0 : i32
    %c0_i32_1 = arith.constant 0 : i32
    return %arg0, %c0_i32, %c0_i32_0 : i32, i32, i32
  }
  func.func @transform_4(%arg0: i32, %arg1: i32) -> (i32, i32, i32) {
    %c0_i32 = arith.constant 0 : i32
    %c0_i32_0 = arith.constant 0 : i32
    %c0_i32_1 = arith.constant 0 : i32
    return %arg0, %c0_i32, %c0_i32_0 : i32, i32, i32
  }
  func.func @transform_5(%arg0: i32, %arg1: i32) -> (i32, i32, i32) {
    %c0_i32 = arith.constant 0 : i32
    %c0_i32_0 = arith.constant 0 : i32
    %c0_i32_1 = arith.constant 0 : i32
    return %arg0, %c0_i32, %c0_i32_0 : i32, i32, i32
  }
}

</mosaic_0001>

<llo_original>
// kernel: tpu_custom_call.1
$region0: #{tpu_custom_call.1}
  #allocation0 [shape = 'u32[]', space=smem, size = 0x4, offset = 0x4, fixed_abs, tag = 'smem constant byte address 0x4 - core index']
  #allocation1 [shape = 'u32[144,128]{1,0:T(1,128)}', space=vmem, size = 0x12000, scoped, tag = 'internal scratch']
  #allocation2 [shape = 'f32[32,512]{1,0:T(8,128)}', space=vmem, size = 0x10000, scoped, tag = 'scratch operand']
  #allocation3 [shape = 'f32[8,128]{1,0:T(8,128)}', space=vmem, size = 0x1000, scoped, tag = 'scratch operand']
  #allocation4 [shape = 'f32[8,128]{1,0:T(8,128)}', space=vmem, size = 0x1000, scoped, tag = 'scratch operand']
  #allocation5 [shape = 'f32[8,128]{1,0:T(8,128)}', space=vmem, size = 0x1000, scoped, tag = 'scratch operand']
  %s0 = inlined_call_operand.vmem [shape: s32[8,1], index: 0, kind: input, shape index: {}]
  %s1 = inlined_call_operand.hbm [shape: f32[2,3,32,128], index: 1, kind: input, shape index: {}]
  %s2 = inlined_call_operand.hbm [shape: f32[2,128,512], index: 2, kind: input, shape index: {}]
  %s3 = inlined_call_operand.vmem [shape: f32[2,1,512], index: 3, kind: input, shape index: {}]
  %s4 = inlined_call_operand.hbm [shape: f32[2,128,512], index: 4, kind: input, shape index: {}]
  %s5 = inlined_call_operand.hbm [shape: f32[2,8,128], index: 5, kind: output, shape index: {}]
  %s6 = sld [smem:[#allocation0]]
  $region73: #{tpu_custom_call.1} parent=0
    _
  %s8 = ssub.s32 1, %s6
  %s9 = scalar_select 0, %s8, %s6
  $region1: #{tpu_custom_call.1} parent=0
    #allocation6 [shape = 'u8[32768]{0}', space=vmem, size = 0x8000, scoped, tag = 'input window, operand 1']
    #allocation7 [shape = 's32[2]{0}', space=sflag, size = 0x8, scoped, tag = 'scoped memory for tpu_custom_call.1']
    #allocation8 [shape = 's32[2]{0}', space=sflag, size = 0x8, scoped, tag = 'scoped memory for tpu_custom_call.1']
    #allocation9 [shape = 'u8[524288]{0}', space=vmem, size = 0x80000, scoped, tag = 'input window, operand 2']
    #allocation10 [shape = 's32[2]{0}', space=sflag, size = 0x8, scoped, tag = 'scoped memory for tpu_custom_call.1']
    #allocation11 [shape = 'u8[524288]{0}', space=vmem, size = 0x80000, scoped, tag = 'input window, operand 4']
    #allocation12 [shape = 'u8[8192]{0}', space=vmem, size = 0x2000, scoped, tag = 'output window, operand 0']
    %10 = vsyncpa [#allocation7], 0
    %s11 = scalar_lea.sflag [#allocation7], 1
    %12 = vsyncpa %s11, 0
    %13 = vsyncpa [#allocation10], 0
    %s14 = scalar_lea.sflag [#allocation10], 1
    %15 = vsyncpa %s14, 0
    %16 = vsyncpa [#allocation8], 0
    %s17 = scalar_lea.sflag [#allocation8], 1
    %18 = vsyncpa %s17, 0
    loop: start=0, step=1, limit=8
    $region2: #{tpu_custom_call.1} parent=1 // loop_pre_header
      _
    $region3: #{tpu_custom_call.1} parent=1 // loop_header
      %s20 = sphi 0, %s24
      %p21 = scmp.ge.s32.totalorder %s20, 8
      %s27 = sphi 0, %s39
      %s28 = sphi 0, %s35
      %s29 = sphi 0, %s27
      %s30 = sphi 0, %s28
      %s31 = sphi 0, %s29
      %s32 = sphi 0, %s30
      %s40 = sphi 0, %s40
      %s42 = sphi 0, %s40
      %s43 = sphi 0, %s42
      %s57 = sphi 0, %s43
      %s65 = sphi 0, %s67
      %s68 = sphi 0, %s65
      %s69 = sphi 0, %s68
      %s85 = sphi 0, %s69
      %s91 = sphi 0, %s93
      %s94 = sphi 0, %s91
      %s95 = sphi 0, %s94
      %s111 = sphi 0, %s95
      %s117 = sphi 0, %s119
      %s120 = sphi 0, %s117
      %s121 = sphi 0, %s120
      %s137 = sphi 0, %s121
      %s143 = sphi 0, %s145
      %s146 = sphi 0, %s143
      %s147 = sphi 0, %s146
      %s163 = sphi 0, %s147
      %s169 = sphi 0, %s171
      %s172 = sphi 0, %s169
      %s173 = sphi 0, %s172
      %s189 = sphi 0, %s173
    $region4: #{tpu_custom_call.1} parent=1 // loop_header_branch
      %23 = sbr.rel (%p21) target = $region8
    $region5: #{tpu_custom_call.1} parent=1 // loop_body
      %s25 = ssub.s32 %s20, 1
      %s26 = ssub.s32 %s20, 2
      %s33 = sadd.s32 1, %s28
      %p34 = scmp.ge.s32.totalorder %s33, 3
      %s35 = scalar_select %p34, 0, %s33
      %s36 = sadd.s32 1, %s27
      %s37 = scalar_select %p34, %s36, %s27
      %p38 = scmp.ge.s32.totalorder %s37, 2
      %s39 = scalar_select %p38, 0, %s37
      %s41 = sadd.s32 %s40, 1
      %p44 = scmp.eq.s32.totalorder %s20, 5
      %p45 = scmp.ne.s32.totalorder %s40, %s42
      %p46 = scmp.eq.s32.totalorder %s20, 0
      %p47 = por %p45, %p46
      %p48 = scmp.ne.s32.totalorder %s40, %s42
      %p49 = scmp.eq.s32.totalorder %s25, 5
      %p50 = por %p48, %p49
      %p51 = scmp.ne.s32.totalorder %s42, %s43
      %p52 = scmp.eq.s32.totalorder %s25, 0
      %p53 = por %p51, %p52
      %p54 = scmp.ne.s32.totalorder %s42, %s43
      %p55 = scmp.eq.s32.totalorder %s26, 5
      %p56 = por %p54, %p55
      %p58 = scmp.ne.s32.totalorder %s43, %s57
      %p59 = scmp.eq.s32.totalorder %s26, 0
      %p60 = por %p58, %p59
      %s61 = ssub.s32 %s27, %s39
      %s62 = ssub.s32 %s28, %s35
      %s63 = sor.u32 %s61, %s62
      %p64 = scmp.eq.s32.totalorder %s63, 0
      %s66 = sadd.s32 %s65, 1
      %s67 = scalar_select %p64, %s65, %s66
      %p70 = pneg %p64
      %p71 = scmp.eq.s32.totalorder %s20, 5
      %p72 = por %p70, %p71
      %p73 = scmp.ne.s32.totalorder %s65, %s68
      %p74 = scmp.eq.s32.totalorder %s20, 0
      %p75 = por %p73, %p74
      %p76 = scmp.ne.s32.totalorder %s65, %s68
      %p77 = scmp.eq.s32.totalorder %s25, 5
      %p78 = por %p76, %p77
      %p79 = scmp.ne.s32.totalorder %s68, %s69
      %p80 = scmp.eq.s32.totalorder %s25, 0
      %p81 = por %p79, %p80
      %p82 = scmp.ne.s32.totalorder %s68, %s69
      %p83 = scmp.eq.s32.totalorder %s26, 5
      %p84 = por %p82, %p83
      %p86 = scmp.ne.s32.totalorder %s69, %s85
      %p87 = scmp.eq.s32.totalorder %s26, 0
      %p88 = por %p86, %p87
      %s89 = ssub.s32 %s27, %s39
      %p90 = scmp.eq.s32.totalorder %s89, 0
      %s92 = sadd.s32 %s91, 1
      %s93 = scalar_select %p90, %s91, %s92
      %p96 = pneg %p90
      %p97 = scmp.eq.s32.totalorder %s20, 5
      %p98 = por %p96, %p97
      %p99 = scmp.ne.s32.totalorder %s91, %s94
      %p100 = scmp.eq.s32.totalorder %s20, 0
      %p101 = por %p99, %p100
      %p102 = scmp.ne.s32.totalorder %s91, %s94
      %p103 = scmp.eq.s32.totalorder %s25, 5
      %p104 = por %p102, %p103
      %p105 = scmp.ne.s32.totalorder %s94, %s95
      %p106 = scmp.eq.s32.totalorder %s25, 0
      %p107 = por %p105, %p106
      %p108 = scmp.ne.s32.totalorder %s94, %s95
      %p109 = scmp.eq.s32.totalorder %s26, 5
      %p110 = por %p108, %p109
      %p112 = scmp.ne.s32.totalorder %s95, %s111
      %p113 = scmp.eq.s32.totalorder %s26, 0
      %p114 = por %p112, %p113
      %s115 = ssub.s32 %s27, %s39
      %p116 = scmp.eq.s32.totalorder %s115, 0
      %s118 = sadd.s32 %s117, 1
      %s119 = scalar_select %p116, %s117, %s118
      %p122 = pneg %p116
      %p123 = scmp.eq.s32.totalorder %s20, 5
      %p124 = por %p122, %p123
      %p125 = scmp.ne.s32.totalorder %s117, %s120
      %p126 = scmp.eq.s32.totalorder %s20, 0
      %p127 = por %p125, %p126
      %p128 = scmp.ne.s32.totalorder %s117, %s120
      %p129 = scmp.eq.s32.totalorder %s25, 5
      %p130 = por %p128, %p129
      %p131 = scmp.ne.s32.totalorder %s120, %s121
      %p132 = scmp.eq.s32.totalorder %s25, 0
      %p133 = por %p131, %p132
      %p134 = scmp.ne.s32.totalorder %s120, %s121
      %p135 = scmp.eq.s32.totalorder %s26, 5
      %p136 = por %p134, %p135
      %p138 = scmp.ne.s32.totalorder %s121, %s137
      %p139 = scmp.eq.s32.totalorder %s26, 0
      %p140 = por %p138, %p139
      %s141 = ssub.s32 %s27, %s39
      %p142 = scmp.eq.s32.totalorder %s141, 0
      %s144 = sadd.s32 %s143, 1
      %s145 = scalar_select %p142, %s143, %s144
      %p148 = pneg %p142
      %p149 = scmp.eq.s32.totalorder %s20, 5
      %p150 = por %p148, %p149
      %p151 = scmp.ne.s32.totalorder %s143, %s146
      %p152 = scmp.eq.s32.totalorder %s20, 0
      %p153 = por %p151, %p152
      %p154 = scmp.ne.s32.totalorder %s143, %s146
      %p155 = scmp.eq.s32.totalorder %s25, 5
      %p156 = por %p154, %p155
      %p157 = scmp.ne.s32.totalorder %s146, %s147
      %p158 = scmp.eq.s32.totalorder %s25, 0
      %p159 = por %p157, %p158
      %p160 = scmp.ne.s32.totalorder %s146, %s147
      %p161 = scmp.eq.s32.totalorder %s26, 5
      %p162 = por %p160, %p161
      %p164 = scmp.ne.s32.totalorder %s147, %s163
      %p165 = scmp.eq.s32.totalorder %s26, 0
      %p166 = por %p164, %p165
      %s167 = ssub.s32 %s27, %s39
      %p168 = scmp.eq.s32.totalorder %s167, 0
      %s170 = sadd.s32 %s169, 1
      %s171 = scalar_select %p168, %s169, %s170
      %p174 = pneg %p168
      %p175 = scmp.eq.s32.totalorder %s20, 5
      %p176 = por %p174, %p175
      %p177 = scmp.ne.s32.totalorder %s169, %s172
      %p178 = scmp.eq.s32.totalorder %s20, 0
      %p179 = por %p177, %p178
      %p180 = scmp.ne.s32.totalorder %s169, %s172
      %p181 = scmp.eq.s32.totalorder %s25, 5
      %p182 = por %p180, %p181
      %p183 = scmp.ne.s32.totalorder %s172, %s173
      %p184 = scmp.eq.s32.totalorder %s25, 0
      %p185 = por %p183, %p184
      %p186 = scmp.ne.s32.totalorder %s172, %s173
      %p187 = scmp.eq.s32.totalorder %s26, 5
      %p188 = por %p186, %p187
      %p190 = scmp.ne.s32.totalorder %s173, %s189
      %p191 = scmp.eq.s32.totalorder %s26, 0
      %p192 = por %p190, %p191
      %p193 = scmp.le.s32.totalorder 1, %s20
      %p194 = scmp.lt.s32.totalorder %s20, 7
      %p195 = pnand %p193, %p194
      %p196 = pneg %p195
      // Predicated region
      $region9: #{tpu_custom_call.1} parent=5 // pred_check
        _
      $region10: #{tpu_custom_call.1} parent=5 // pred_check_branch
        %198 = sbr.rel (%p195) target = $region12
      $region11: #{tpu_custom_call.1} parent=5 // pred_region
        %s199 = ssub.s32 %s20, 1
        // Predicated region
        $region13: #{tpu_custom_call.1} parent=11 // pred_check
          %p200 = pneg %p53
        $region14: #{tpu_custom_call.1} parent=11 // pred_check_branch
          %202 = sbr.rel (%p200) target = $region16
        $region15: #{tpu_custom_call.1} parent=11 // pred_region
          _
        $region16: #{tpu_custom_call.1} parent=11 // pred_fallthru
          _
      $region12: #{tpu_custom_call.1} parent=5 // pred_fallthru
        _
      %p203 = scmp.lt.s32.totalorder %s20, 6
      // Predicated region
      $region17: #{tpu_custom_call.1} parent=5 // pred_check
        %p204 = pneg %p203
      $region18: #{tpu_custom_call.1} parent=5 // pred_check_branch
        %206 = sbr.rel (%p204) target = $region20
      $region19: #{tpu_custom_call.1} parent=5 // pred_region
        // Predicated region
        $region21: #{tpu_custom_call.1} parent=19 // pred_check
          %p207 = pneg %p75
        $region22: #{tpu_custom_call.1} parent=19 // pred_check_branch
          %209 = sbr.rel (%p207) target = $region24
        $region23: #{tpu_custom_call.1} parent=19 // pred_region
          %s210 = sand.u32 %s65, 1
          %s211 = scalar_lea.sflag [#allocation7], %s210
          %s212 = sand.u32 %s65, 1
          %s213 = smul.addr %s212, 32
          %s214 = scalar_lea.vmem [#allocation6], %s213
          %s216 = ssub.s32 512, 512
          %217 = vsyncadd %s211, %s216
          %s218 = smul.addr %s28, 4
          %s219 = smul.addr %s27, 12
          %s220 = sadd.s32 %s218, %s219
          %s221 = smul.addr %s220, 128
          %s222 = scalar_lea.hbm %s1, %s221
          %s223 = sshll.u32 %s214, 4
          %s224 = int_to_ptr.vmem [resolvable:$true] %s223
          %229 = dma.hbm_to_vmem [thread:$0]  %s222, 512, %s224, %s211, 128, 128, 8
        $region24: #{tpu_custom_call.1} parent=19 // pred_fallthru
          _
        // Predicated region
        $region25: #{tpu_custom_call.1} parent=19 // pred_check
          %p230 = pneg %p101
        $region26: #{tpu_custom_call.1} parent=19 // pred_check_branch
          %232 = sbr.rel (%p230) target = $region28
        $region27: #{tpu_custom_call.1} parent=19 // pred_region
          %s233 = sand.u32 %s20, 1
          %s234 = scalar_lea.sflag [#allocation10], %s233
          %s235 = sand.u32 %s91, 1
          %s236 = smul.addr %s235, 512
          %s237 = scalar_lea.vmem [#allocation9], %s236
          %s239 = ssub.s32 8192, 8192
          %240 = vsyncadd %s234, %s239
          %s241 = smul.addr %s27, 64
          %s242 = smul.addr %s241, 128
          %s243 = scalar_lea.hbm %s2, %s242
          %s244 = sshll.u32 %s237, 4
          %s245 = int_to_ptr.vmem [resolvable:$true] %s244
          %250 = dma.hbm_to_vmem [thread:$0]  %s243, 8192, %s245, %s234, 512, 512, 32
        $region28: #{tpu_custom_call.1} parent=19 // pred_fallthru
          _
        // Predicated region
        $region29: #{tpu_custom_call.1} parent=19 // pred_check
          %p251 = pneg %p127
        $region30: #{tpu_custom_call.1} parent=19 // pred_check_branch
          %253 = sbr.rel (%p251) target = $region32
        $region31: #{tpu_custom_call.1} parent=19 // pred_region
          %p254 = scmp.lt.s32.totalorder %s27, 1
          %s255 = scalar_select %p254, %s27, 1
          %s256 = smul.addr %s255, 4
          %s257 = scalar_lea.vmem %s3, %s256
        $region32: #{tpu_custom_call.1} parent=19 // pred_fallthru
          _
        // Predicated region
        $region33: #{tpu_custom_call.1} parent=19 // pred_check
          %p258 = pneg %p153
        $region34: #{tpu_custom_call.1} parent=19 // pred_check_branch
          %260 = sbr.rel (%p258) target = $region36
        $region35: #{tpu_custom_call.1} parent=19 // pred_region
          %s261 = sand.u32 %s20, 1
          %s262 = scalar_lea.sflag [#allocation10], %s261
          %s263 = sand.u32 %s143, 1
          %s264 = smul.addr %s263, 512
          %s265 = scalar_lea.vmem [#allocation11], %s264
          %s267 = ssub.s32 8192, 8192
          %268 = vsyncadd %s262, %s267
          %s269 = smul.addr %s27, 64
          %s270 = smul.addr %s269, 128
          %s271 = scalar_lea.hbm %s4, %s270
          %s272 = sshll.u32 %s265, 4
          %s273 = int_to_ptr.vmem [resolvable:$true] %s272
          %278 = dma.hbm_to_vmem [thread:$0]  %s271, 8192, %s273, %s262, 512, 512, 32
        $region36: #{tpu_custom_call.1} parent=19 // pred_fallthru
          _
      $region20: #{tpu_custom_call.1} parent=5 // pred_fallthru
        _
      %p279 = scmp.le.s32.totalorder 1, %s20
      %p280 = scmp.lt.s32.totalorder %s20, 7
      %p281 = pnand %p279, %p280
      %p282 = pneg %p281
      // Predicated region
      $region37: #{tpu_custom_call.1} parent=5 // pred_check
        _
      $region38: #{tpu_custom_call.1} parent=5 // pred_check_branch
        %284 = sbr.rel (%p281) target = $region40
      $region39: #{tpu_custom_call.1} parent=5 // pred_region
        %s285 = ssub.s32 %s20, 1
        %s286 = sand.u32 %s68, 1
        %s287 = scalar_lea.sflag [#allocation7], %s286
        %s288 = sand.u32 %s68, 1
        %s289 = smul.addr %s288, 32
        %s290 = scalar_lea.vmem [#allocation6], %s289
        // Predicated region
        $region41: #{tpu_custom_call.1} parent=39 // pred_check
          %p291 = pneg %p81
        $region42: #{tpu_custom_call.1} parent=39 // pred_check_branch
          %293 = sbr.rel (%p291) target = $region44
        $region43: #{tpu_custom_call.1} parent=39 // pred_region
          %294 = dma.done %s287, 512
        $region44: #{tpu_custom_call.1} parent=39 // pred_fallthru
          _
        %s295 = sand.u32 %s25, 1
        %s296 = scalar_lea.sflag [#allocation10], %s295
        %s297 = sand.u32 %s94, 1
        %s298 = smul.addr %s297, 512
        %s299 = scalar_lea.vmem [#allocation9], %s298
        // Predicated region
        $region45: #{tpu_custom_call.1} parent=39 // pred_check
          %p300 = pneg %p107
        $region46: #{tpu_custom_call.1} parent=39 // pred_check_branch
          %302 = sbr.rel (%p300) target = $region48
        $region47: #{tpu_custom_call.1} parent=39 // pred_region
          %303 = dma.done %s296, 8192
        $region48: #{tpu_custom_call.1} parent=39 // pred_fallthru
          _
        %s304 = sand.u32 %s25, 1
        %s305 = scalar_lea.sflag [#allocation10], %s304
        %s306 = sand.u32 %s146, 1
        %s307 = smul.addr %s306, 512
        %s308 = scalar_lea.vmem [#allocation11], %s307
        // Predicated region
        $region49: #{tpu_custom_call.1} parent=39 // pred_check
          %p309 = pneg %p159
        $region50: #{tpu_custom_call.1} parent=39 // pred_check_branch
          %311 = sbr.rel (%p309) target = $region52
        $region51: #{tpu_custom_call.1} parent=39 // pred_region
          %312 = dma.done %s305, 8192
        $region52: #{tpu_custom_call.1} parent=39 // pred_fallthru
          _
        %p313 = pneg %p53
        %p314 = pneg %p50
        %s315 = sand.u32 %s68, 1
        %s316 = scalar_lea.sflag [#allocation7], %s315
        %s317 = sand.u32 %s68, 1
        %s318 = smul.addr %s317, 32
        %s319 = scalar_lea.vmem [#allocation6], %s318
        %p320 = pneg %p81
        %p321 = pneg %p78
        %s322 = sand.u32 %s25, 1
        %s323 = scalar_lea.sflag [#allocation10], %s322
        %s324 = sand.u32 %s94, 1
        %s325 = smul.addr %s324, 512
        %s326 = scalar_lea.vmem [#allocation9], %s325
        %p327 = pneg %p107
        %p328 = pneg %p104
        %p329 = scmp.lt.s32.totalorder %s29, 1
        %s330 = scalar_select %p329, %s29, 1
        %s331 = smul.addr %s330, 4
        %s332 = scalar_lea.vmem %s3, %s331
        %p333 = pneg %p133
        %p334 = pneg %p130
        %s335 = sand.u32 %s25, 1
        %s336 = scalar_lea.sflag [#allocation10], %s335
        %s337 = sand.u32 %s146, 1
        %s338 = smul.addr %s337, 512
        %s339 = scalar_lea.vmem [#allocation11], %s338
        %p340 = pneg %p159
        %p341 = pneg %p156
        %p342 = pneg %p185
        %p343 = pneg %p182
        %s344 = sand.u32 %s172, 1
        %s345 = scalar_lea.sflag [#allocation8], %s344
        %s346 = sand.u32 %s172, 1
        %s347 = smul.addr %s346, 8
        %s348 = scalar_lea.vmem [#allocation12], %s347
        %p349 = scmp.lt.s32.totalorder %s29, 1
        %s350 = scalar_select %p349, %s29, 1
        %s351 = smul.addr %s350, 4
        %s352 = scalar_lea.vmem %s3, %s351
        %p353 = scmp.eq.s32.totalorder %s30, 0
        // Predicated region
        $region53: #{tpu_custom_call.1} parent=39 // pred_check
          %p354 = pneg %p353
        $region54: #{tpu_custom_call.1} parent=39 // pred_check_branch
          %356 = sbr.rel (%p354) target = $region56
        $region55: #{tpu_custom_call.1} parent=39 // pred_region
          %357 = vst [vmem:[#allocation3] sm:$0xff] 0.0
          %358 = vst [vmem:[#allocation4] sm:$0xff] 0.0
          %359 = vst [vmem:[#allocation5] sm:$0xff] -inf
        $region56: #{tpu_custom_call.1} parent=39 // pred_fallthru
          _
        %v360 = vld [vmem:[%s290] sm:$0xff]
        %v361 = vld [vmem:[%s290 + $0x8] sm:$0xff]
        %v362 = vld [vmem:[%s290 + $0x10] sm:$0xff]
        %v363 = vld [vmem:[%s290 + $0x18] sm:$0xff]
        %v364 = vld [vmem:[%s299] sm:$0xff]
        %v365 = vld [vmem:[%s299 + $0x8] sm:$0xff]
        %v366 = vld [vmem:[%s299 + $0x10] sm:$0xff]
        %v367 = vld [vmem:[%s299 + $0x18] sm:$0xff]
        %v368 = vld [vmem:[%s299 + $0x20] sm:$0xff]
        %v369 = vld [vmem:[%s299 + $0x28] sm:$0xff]
        %v370 = vld [vmem:[%s299 + $0x30] sm:$0xff]
        %v371 = vld [vmem:[%s299 + $0x38] sm:$0xff]
        %v372 = vld [vmem:[%s299 + $0x40] sm:$0xff]
        %v373 = vld [vmem:[%s299 + $0x48] sm:$0xff]
        %v374 = vld [vmem:[%s299 + $0x50] sm:$0xff]
        %v375 = vld [vmem:[%s299 + $0x58] sm:$0xff]
        %v376 = vld [vmem:[%s299 + $0x60] sm:$0xff]
        %v377 = vld [vmem:[%s299 + $0x68] sm:$0xff]
        %v378 = vld [vmem:[%s299 + $0x70] sm:$0xff]
        %v379 = vld [vmem:[%s299 + $0x78] sm:$0xff]
        %v380 = vld [vmem:[%s299 + $0x80] sm:$0xff]
        %v381 = vld [vmem:[%s299 + $0x88] sm:$0xff]
        %v382 = vld [vmem:[%s299 + $0x90] sm:$0xff]
        %v383 = vld [vmem:[%s299 + $0x98] sm:$0xff]
        %v384 = vld [vmem:[%s299 + $0xa0] sm:$0xff]
        %v385 = vld [vmem:[%s299 + $0xa8] sm:$0xff]
        %v386 = vld [vmem:[%s299 + $0xb0] sm:$0xff]
        %v387 = vld [vmem:[%s299 + $0xb8] sm:$0xff]
        %v388 = vld [vmem:[%s299 + $0xc0] sm:$0xff]
        %v389 = vld [vmem:[%s299 + $0xc8] sm:$0xff]
        %v390 = vld [vmem:[%s299 + $0xd0] sm:$0xff]
        %v391 = vld [vmem:[%s299 + $0xd8] sm:$0xff]
        %v392 = vld [vmem:[%s299 + $0xe0] sm:$0xff]
        %v393 = vld [vmem:[%s299 + $0xe8] sm:$0xff]
        %v394 = vld [vmem:[%s299 + $0xf0] sm:$0xff]
        %v395 = vld [vmem:[%s299 + $0xf8] sm:$0xff]
        %v396 = vld [vmem:[%s299 + $0x100] sm:$0xff]
        %v397 = vld [vmem:[%s299 + $0x108] sm:$0xff]
        %v398 = vld [vmem:[%s299 + $0x110] sm:$0xff]
        %v399 = vld [vmem:[%s299 + $0x118] sm:$0xff]
        %v400 = vld [vmem:[%s299 + $0x120] sm:$0xff]
        %v401 = vld [vmem:[%s299 + $0x128] sm:$0xff]
        %v402 = vld [vmem:[%s299 + $0x130] sm:$0xff]
        %v403 = vld [vmem:[%s299 + $0x138] sm:$0xff]
        %v404 = vld [vmem:[%s299 + $0x140] sm:$0xff]
        %v405 = vld [vmem:[%s299 + $0x148] sm:$0xff]
        %v406 = vld [vmem:[%s299 + $0x150] sm:$0xff]
        %v407 = vld [vmem:[%s299 + $0x158] sm:$0xff]
        %v408 = vld [vmem:[%s299 + $0x160] sm:$0xff]
        %v409 = vld [vmem:[%s299 + $0x168] sm:$0xff]
        %v410 = vld [vmem:[%s299 + $0x170] sm:$0xff]
        %v411 = vld [vmem:[%s299 + $0x178] sm:$0xff]
        %v412 = vld [vmem:[%s299 + $0x180] sm:$0xff]
        %v413 = vld [vmem:[%s299 + $0x188] sm:$0xff]
        %v414 = vld [vmem:[%s299 + $0x190] sm:$0xff]
        %v415 = vld [vmem:[%s299 + $0x198] sm:$0xff]
        %v416 = vld [vmem:[%s299 + $0x1a0] sm:$0xff]
        %v417 = vld [vmem:[%s299 + $0x1a8] sm:$0xff]
        %v418 = vld [vmem:[%s299 + $0x1b0] sm:$0xff]
        %v419 = vld [vmem:[%s299 + $0x1b8] sm:$0xff]
        %v420 = vld [vmem:[%s299 + $0x1c0] sm:$0xff]
        %v421 = vld [vmem:[%s299 + $0x1c8] sm:$0xff]
        %v422 = vld [vmem:[%s299 + $0x1d0] sm:$0xff]
        %v423 = vld [vmem:[%s299 + $0x1d8] sm:$0xff]
        %v424 = vld [vmem:[%s299 + $0x1e0] sm:$0xff]
        %v425 = vld [vmem:[%s299 + $0x1e8] sm:$0xff]
        %v426 = vld [vmem:[%s299 + $0x1f0] sm:$0xff]
        %v427 = vld [vmem:[%s299 + $0x1f8] sm:$0xff]
        %v428 = vld [vmem:[%s352] sm:$0xf]
        %v430 = vlaneseq
        %v431 = vshrl.u32 %v430, 7
        %v432 = vsub.s32 0, %v431
        %v433 = vrot.slane %v428, %v432
        %v434 = vlaneseq
        %v435 = vshrl.u32 %v434, 7
        %v436 = vsub.s32 1, %v435
        %v437 = vrot.slane %v428, %v436
        %v438 = vlaneseq
        %v439 = vshrl.u32 %v438, 7
        %v440 = vsub.s32 2, %v439
        %v441 = vrot.slane %v428, %v440
        %v442 = vlaneseq
        %v443 = vshrl.u32 %v442, 7
        %v444 = vsub.s32 3, %v443
        %v445 = vrot.slane %v428, %v444
        %450 = vmatprep.subr.mxu0 %v365
        %451 = vmatpush1.msra.mxu0 %v364
        %452 = vmatprep.subr.mxu0 %v369
        %453 = vmatpush1.msra.mxu0 %v368
        %454 = vmatprep.subr.mxu0 %v373
        %455 = vmatpush1.msra.mxu0 %v372
        %456 = vmatprep.subr.mxu0 %v377
        %457 = vmatpush1.msra.mxu0 %v376
        %458 = vmatprep.subr.mxu0 %v381
        %459 = vmatpush1.msra.mxu0 %v380
        %460 = vmatprep.subr.mxu0 %v385
        %461 = vmatpush1.msra.mxu0 %v384
        %462 = vmatprep.subr.mxu0 %v389
        %463 = vmatpush1.msra.mxu0 %v388
        %464 = vmatprep.subr.mxu0 %v393
        %465 = vmatpush1.msra.mxu0 %v392
        %466 = vmatprep.subr.mxu0 %v397
        %467 = vmatpush1.msra.mxu0 %v396
        %468 = vmatprep.subr.mxu0 %v401
        %469 = vmatpush1.msra.mxu0 %v400
        %470 = vmatprep.subr.mxu0 %v405
        %471 = vmatpush1.msra.mxu0 %v404
        %472 = vmatprep.subr.mxu0 %v409
        %473 = vmatpush1.msra.mxu0 %v408
        %474 = vmatprep.subr.mxu0 %v413
        %475 = vmatpush1.msra.mxu0 %v412
        %476 = vmatprep.subr.mxu0 %v417
        %477 = vmatpush1.msra.mxu0 %v416
        %478 = vmatprep.subr.mxu0 %v421
        %479 = vmatpush1.msra.mxu0 %v420
        %480 = vmatprep.subr.mxu0 %v425
        %481 = vmatpush1.msra.mxu0 %v424
        %482 = vmatprep.subr.mxu0 0.0
        %483 = vmatpush1.msra.mxu0 0.0
        %484 = vmatprep.subr.mxu0 0.0
        %485 = vmatpush1.msra.mxu0 0.0
        %486 = vmatprep.subr.mxu0 0.0
        %487 = vmatpush1.msra.mxu0 0.0
        %488 = vmatprep.subr.mxu0 0.0
        %489 = vmatpush1.msra.mxu0 0.0
        %490 = vmatprep.subr.mxu0 0.0
        %491 = vmatpush1.msra.mxu0 0.0
        %492 = vmatprep.subr.mxu0 0.0
        %493 = vmatpush1.msra.mxu0 0.0
        %494 = vmatprep.subr.mxu0 0.0
        %495 = vmatpush1.msra.mxu0 0.0
        %496 = vmatprep.subr.mxu0 0.0
        %497 = vmatpush1.msra.mxu0 0.0
        %498 = vmatprep.subr.mxu0 0.0
        %499 = vmatpush1.msra.mxu0 0.0
        %500 = vmatprep.subr.mxu0 0.0
        %501 = vmatpush1.msra.mxu0 0.0
        %502 = vmatprep.subr.mxu0 0.0
        %503 = vmatpush1.msra.mxu0 0.0
        %504 = vmatprep.subr.mxu0 0.0
        %505 = vmatpush1.msra.mxu0 0.0
        %506 = vmatprep.subr.mxu0 0.0
        %507 = vmatpush1.msra.mxu0 0.0
        %508 = vmatprep.subr.mxu0 0.0
        %509 = vmatpush1.msra.mxu0 0.0
        %510 = vmatprep.subr.mxu0 0.0
        %511 = vmatpush1.msra.mxu0 0.0
        %512 = vmatprep.subr.mxu0 0.0
        %513 = vmatpush1.msra.mxu0 0.0
        %514 = vmatprep.mubr.f32.mxu0 0.0
        %515 = vmatmul.mubr.f32.gmra.mrb[0].mxu0 %v360
        %v516 = vpop.f32.mrb[0].mxu0
        %v517 = vadd.f32 %v433, %v516
        %v518 = vpop.f32.mrb[0].mxu0
        %v519 = vadd.f32 %v437, %v518
        %520 = vmatprep.mubr.f32.mxu0 0.0
        %521 = vmatmul.mubr.f32.gmra.mrb[0].mxu0 %v361
        %v522 = vpop.f32.mrb[0].mxu0
        %v523 = vadd.f32 %v433, %v522
        %v524 = vpop.f32.mrb[0].mxu0
        %v525 = vadd.f32 %v437, %v524
        %526 = vmatprep.mubr.f32.mxu0 0.0
        %527 = vmatmul.mubr.f32.gmra.mrb[0].mxu0 %v362
        %v528 = vpop.f32.mrb[0].mxu0
        %v529 = vadd.f32 %v433, %v528
        %v530 = vpop.f32.mrb[0].mxu0
        %v531 = vadd.f32 %v437, %v530
        %532 = vmatprep.mubr.f32.mxu0 0.0
        %533 = vmatmul.mubr.f32.gmra.mrb[0].mxu0 %v363
        %v534 = vpop.f32.mrb[0].mxu0
        %v535 = vadd.f32 %v433, %v534
        %v536 = vpop.f32.mrb[0].mxu0
        %v537 = vadd.f32 %v437, %v536
        %538 = vdwg.mxu0
        %539 = vmatprep.subr.mxu0 %v367
        %540 = vmatpush1.msra.mxu0 %v366
        %541 = vmatprep.subr.mxu0 %v371
        %542 = vmatpush1.msra.mxu0 %v370
        %543 = vmatprep.subr.mxu0 %v375
        %544 = vmatpush1.msra.mxu0 %v374
        %545 = vmatprep.subr.mxu0 %v379
        %546 = vmatpush1.msra.mxu0 %v378
        %547 = vmatprep.subr.mxu0 %v383
        %548 = vmatpush1.msra.mxu0 %v382
        %549 = vmatprep.subr.mxu0 %v387
        %550 = vmatpush1.msra.mxu0 %v386
        %551 = vmatprep.subr.mxu0 %v391
        %552 = vmatpush1.msra.mxu0 %v390
        %553 = vmatprep.subr.mxu0 %v395
        %554 = vmatpush1.msra.mxu0 %v394
        %555 = vmatprep.subr.mxu0 %v399
        %556 = vmatpush1.msra.mxu0 %v398
        %557 = vmatprep.subr.mxu0 %v403
        %558 = vmatpush1.msra.mxu0 %v402
        %559 = vmatprep.subr.mxu0 %v407
        %560 = vmatpush1.msra.mxu0 %v406
        %561 = vmatprep.subr.mxu0 %v411
        %562 = vmatpush1.msra.mxu0 %v410
        %563 = vmatprep.subr.mxu0 %v415
        %564 = vmatpush1.msra.mxu0 %v414
        %565 = vmatprep.subr.mxu0 %v419
        %566 = vmatpush1.msra.mxu0 %v418
        %567 = vmatprep.subr.mxu0 %v423
        %568 = vmatpush1.msra.mxu0 %v422
        %569 = vmatprep.subr.mxu0 %v427
        %570 = vmatpush1.msra.mxu0 %v426
        %571 = vmatprep.subr.mxu0 0.0
        %572 = vmatpush1.msra.mxu0 0.0
        %573 = vmatprep.subr.mxu0 0.0
        %574 = vmatpush1.msra.mxu0 0.0
        %575 = vmatprep.subr.mxu0 0.0
        %576 = vmatpush1.msra.mxu0 0.0
        %577 = vmatprep.subr.mxu0 0.0
        %578 = vmatpush1.msra.mxu0 0.0
        %579 = vmatprep.subr.mxu0 0.0
        %580 = vmatpush1.msra.mxu0 0.0
        %581 = vmatprep.subr.mxu0 0.0
        %582 = vmatpush1.msra.mxu0 0.0
        %583 = vmatprep.subr.mxu0 0.0
        %584 = vmatpush1.msra.mxu0 0.0
        %585 = vmatprep.subr.mxu0 0.0
        %586 = vmatpush1.msra.mxu0 0.0
        %587 = vmatprep.subr.mxu0 0.0
        %588 = vmatpush1.msra.mxu0 0.0
        %589 = vmatprep.subr.mxu0 0.0
        %590 = vmatpush1.msra.mxu0 0.0
        %591 = vmatprep.subr.mxu0 0.0
        %592 = vmatpush1.msra.mxu0 0.0
        %593 = vmatprep.subr.mxu0 0.0
        %594 = vmatpush1.msra.mxu0 0.0
        %595 = vmatprep.subr.mxu0 0.0
        %596 = vmatpush1.msra.mxu0 0.0
        %597 = vmatprep.subr.mxu0 0.0
        %598 = vmatpush1.msra.mxu0 0.0
        %599 = vmatprep.subr.mxu0 0.0
        %600 = vmatpush1.msra.mxu0 0.0
        %601 = vmatprep.subr.mxu0 0.0
        %602 = vmatpush1.msra.mxu0 0.0
        %603 = vmatprep.mubr.f32.mxu0 0.0
        %604 = vmatmul.mubr.f32.gmra.mrb[0].mxu0 %v360
        %v605 = vpop.f32.mrb[0].mxu0
        %v606 = vadd.f32 %v441, %v605
        %v607 = vpop.f32.mrb[0].mxu0
        %v608 = vadd.f32 %v445, %v607
        %609 = vmatprep.mubr.f32.mxu0 0.0
        %610 = vmatmul.mubr.f32.gmra.mrb[0].mxu0 %v361
        %v611 = vpop.f32.mrb[0].mxu0
        %v612 = vadd.f32 %v441, %v611
        %v613 = vpop.f32.mrb[0].mxu0
        %v614 = vadd.f32 %v445, %v613
        %615 = vmatprep.mubr.f32.mxu0 0.0
        %616 = vmatmul.mubr.f32.gmra.mrb[0].mxu0 %v362
        %v617 = vpop.f32.mrb[0].mxu0
        %v618 = vadd.f32 %v441, %v617
        %v619 = vpop.f32.mrb[0].mxu0
        %v620 = vadd.f32 %v445, %v619
        %621 = vmatprep.mubr.f32.mxu0 0.0
        %622 = vmatmul.mubr.f32.gmra.mrb[0].mxu0 %v363
        %v623 = vpop.f32.mrb[0].mxu0
        %v624 = vadd.f32 %v441, %v623
        %v625 = vpop.f32.mrb[0].mxu0
        %v626 = vadd.f32 %v445, %v625
        %627 = vdwg.mxu0
        %628 = vst [vmem:[#allocation2] sm:$0xff] %v517
        %629 = vst [vmem:[#allocation2 + $0x8] sm:$0xff] %v519
        %630 = vst [vmem:[#allocation2 + $0x10] sm:$0xff] %v606
        %631 = vst [vmem:[#allocation2 + $0x18] sm:$0xff] %v608
        %632 = vst [vmem:[#allocation2 + $0x20] sm:$0xff] %v523
        %633 = vst [vmem:[#allocation2 + $0x28] sm:$0xff] %v525
        %634 = vst [vmem:[#allocation2 + $0x30] sm:$0xff] %v612
        %635 = vst [vmem:[#allocation2 + $0x38] sm:$0xff] %v614
        %636 = vst [vmem:[#allocation2 + $0x40] sm:$0xff] %v529
        %637 = vst [vmem:[#allocation2 + $0x48] sm:$0xff] %v531
        %638 = vst [vmem:[#allocation2 + $0x50] sm:$0xff] %v618
        %639 = vst [vmem:[#allocation2 + $0x58] sm:$0xff] %v620
        %640 = vst [vmem:[#allocation2 + $0x60] sm:$0xff] %v535
        %641 = vst [vmem:[#allocation2 + $0x68] sm:$0xff] %v537
        %642 = vst [vmem:[#allocation2 + $0x70] sm:$0xff] %v624
        %643 = vst [vmem:[#allocation2 + $0x78] sm:$0xff] %v626
        %v644 = vld [vmem:[%s0] sm:$0xff]
        %v645 = vld [vmem:[%s308] sm:$0xff]
        %v646 = vld [vmem:[%s308 + $0x8] sm:$0xff]
        %v647 = vld [vmem:[%s308 + $0x10] sm:$0xff]
        %v648 = vld [vmem:[%s308 + $0x18] sm:$0xff]
        %v649 = vld [vmem:[%s308 + $0x20] sm:$0xff]
        %v650 = vld [vmem:[%s308 + $0x28] sm:$0xff]
        %v651 = vld [vmem:[%s308 + $0x30] sm:$0xff]
        %v652 = vld [vmem:[%s308 + $0x38] sm:$0xff]
        %v653 = vld [vmem:[%s308 + $0x40] sm:$0xff]
        %v654 = vld [vmem:[%s308 + $0x48] sm:$0xff]
        %v655 = vld [vmem:[%s308 + $0x50] sm:$0xff]
        %v656 = vld [vmem:[%s308 + $0x58] sm:$0xff]
        %v657 = vld [vmem:[%s308 + $0x60] sm:$0xff]
        %v658 = vld [vmem:[%s308 + $0x68] sm:$0xff]
        %v659 = vld [vmem:[%s308 + $0x70] sm:$0xff]
        %v660 = vld [vmem:[%s308 + $0x78] sm:$0xff]
        %v661 = vld [vmem:[%s308 + $0x80] sm:$0xff]
        %v662 = vld [vmem:[%s308 + $0x88] sm:$0xff]
        %v663 = vld [vmem:[%s308 + $0x90] sm:$0xff]
        %v664 = vld [vmem:[%s308 + $0x98] sm:$0xff]
        %v665 = vld [vmem:[%s308 + $0xa0] sm:$0xff]
        %v666 = vld [vmem:[%s308 + $0xa8] sm:$0xff]
        %v667 = vld [vmem:[%s308 + $0xb0] sm:$0xff]
        %v668 = vld [vmem:[%s308 + $0xb8] sm:$0xff]
        %v669 = vld [vmem:[%s308 + $0xc0] sm:$0xff]
        %v670 = vld [vmem:[%s308 + $0xc8] sm:$0xff]
        %v671 = vld [vmem:[%s308 + $0xd0] sm:$0xff]
        %v672 = vld [vmem:[%s308 + $0xd8] sm:$0xff]
        %v673 = vld [vmem:[%s308 + $0xe0] sm:$0xff]
        %v674 = vld [vmem:[%s308 + $0xe8] sm:$0xff]
        %v675 = vld [vmem:[%s308 + $0xf0] sm:$0xff]
        %v676 = vld [vmem:[%s308 + $0xf8] sm:$0xff]
        %v677 = vld [vmem:[%s308 + $0x100] sm:$0xff]
        %v678 = vld [vmem:[%s308 + $0x108] sm:$0xff]
        %v679 = vld [vmem:[%s308 + $0x110] sm:$0xff]
        %v680 = vld [vmem:[%s308 + $0x118] sm:$0xff]
        %v681 = vld [vmem:[%s308 + $0x120] sm:$0xff]
        %v682 = vld [vmem:[%s308 + $0x128] sm:$0xff]
        %v683 = vld [vmem:[%s308 + $0x130] sm:$0xff]
        %v684 = vld [vmem:[%s308 + $0x138] sm:$0xff]
        %v685 = vld [vmem:[%s308 + $0x140] sm:$0xff]
        %v686 = vld [vmem:[%s308 + $0x148] sm:$0xff]
        %v687 = vld [vmem:[%s308 + $0x150] sm:$0xff]
        %v688 = vld [vmem:[%s308 + $0x158] sm:$0xff]
        %v689 = vld [vmem:[%s308 + $0x160] sm:$0xff]
        %v690 = vld [vmem:[%s308 + $0x168] sm:$0xff]
        %v691 = vld [vmem:[%s308 + $0x170] sm:$0xff]
        %v692 = vld [vmem:[%s308 + $0x178] sm:$0xff]
        %v693 = vld [vmem:[%s308 + $0x180] sm:$0xff]
        %v694 = vld [vmem:[%s308 + $0x188] sm:$0xff]
        %v695 = vld [vmem:[%s308 + $0x190] sm:$0xff]
        %v696 = vld [vmem:[%s308 + $0x198] sm:$0xff]
        %v697 = vld [vmem:[%s308 + $0x1a0] sm:$0xff]
        %v698 = vld [vmem:[%s308 + $0x1a8] sm:$0xff]
        %v699 = vld [vmem:[%s308 + $0x1b0] sm:$0xff]
        %v700 = vld [vmem:[%s308 + $0x1b8] sm:$0xff]
        %v701 = vld [vmem:[%s308 + $0x1c0] sm:$0xff]
        %v702 = vld [vmem:[%s308 + $0x1c8] sm:$0xff]
        %v703 = vld [vmem:[%s308 + $0x1d0] sm:$0xff]
        %v704 = vld [vmem:[%s308 + $0x1d8] sm:$0xff]
        %v705 = vld [vmem:[%s308 + $0x1e0] sm:$0xff]
        %v706 = vld [vmem:[%s308 + $0x1e8] sm:$0xff]
        %v707 = vld [vmem:[%s308 + $0x1f0] sm:$0xff]
        %v708 = vld [vmem:[%s308 + $0x1f8] sm:$0xff]
        %v709 = vld [vmem:[#allocation3] sm:$0xff]
        %v710 = vld [vmem:[#allocation4] sm:$0xff]
        %v711 = vld [vmem:[#allocation5] sm:$0xff]
        %s712 = smul.u32 0, 4
        %s713 = smul.addr %s712, 8
        %s714 = scalar_lea.vmem [#allocation2], %s713
        %v715 = vld [vmem:[%s714] sm:$0xff]
        %v716 = vld [vmem:[%s714 + $0x8] sm:$0xff]
        %v717 = vld [vmem:[%s714 + $0x10] sm:$0xff]
        %v718 = vld [vmem:[%s714 + $0x18] sm:$0xff]
        %719 = vmatprep.subr.mxu0 %v646
        %720 = vmatpush1.msra.mxu0 %v645
        %721 = vmatprep.subr.mxu0 %v650
        %722 = vmatpush1.msra.mxu0 %v649
        %723 = vmatprep.subr.mxu0 %v654
        %724 = vmatpush1.msra.mxu0 %v653
        %725 = vmatprep.subr.mxu0 %v658
        %726 = vmatpush1.msra.mxu0 %v657
        %727 = vmatprep.subr.mxu0 %v662
        %728 = vmatpush1.msra.mxu0 %v661
        %729 = vmatprep.subr.mxu0 %v666
        %730 = vmatpush1.msra.mxu0 %v665
        %731 = vmatprep.subr.mxu0 %v670
        %732 = vmatpush1.msra.mxu0 %v669
        %733 = vmatprep.subr.mxu0 %v674
        %734 = vmatpush1.msra.mxu0 %v673
        %735 = vmatprep.subr.mxu0 %v678
        %736 = vmatpush1.msra.mxu0 %v677
        %737 = vmatprep.subr.mxu0 %v682
        %738 = vmatpush1.msra.mxu0 %v681
        %739 = vmatprep.subr.mxu0 %v686
        %740 = vmatpush1.msra.mxu0 %v685
        %741 = vmatprep.subr.mxu0 %v690
        %742 = vmatpush1.msra.mxu0 %v689
        %743 = vmatprep.subr.mxu0 %v694
        %744 = vmatpush1.msra.mxu0 %v693
        %745 = vmatprep.subr.mxu0 %v698
        %746 = vmatpush1.msra.mxu0 %v697
        %747 = vmatprep.subr.mxu0 %v702
        %748 = vmatpush1.msra.mxu0 %v701
        %749 = vmatprep.subr.mxu0 %v706
        %750 = vmatpush1.msra.mxu0 %v705
        %751 = vmatprep.subr.mxu0 0.0
        %752 = vmatpush1.msra.mxu0 0.0
        %753 = vmatprep.subr.mxu0 0.0
        %754 = vmatpush1.msra.mxu0 0.0
        %755 = vmatprep.subr.mxu0 0.0
        %756 = vmatpush1.msra.mxu0 0.0
        %757 = vmatprep.subr.mxu0 0.0
        %758 = vmatpush1.msra.mxu0 0.0
        %759 = vmatprep.subr.mxu0 0.0
        %760 = vmatpush1.msra.mxu0 0.0
        %761 = vmatprep.subr.mxu0 0.0
        %762 = vmatpush1.msra.mxu0 0.0
        %763 = vmatprep.subr.mxu0 0.0
        %764 = vmatpush1.msra.mxu0 0.0
        %765 = vmatprep.subr.mxu0 0.0
        %766 = vmatpush1.msra.mxu0 0.0
        %767 = vmatprep.subr.mxu0 0.0
        %768 = vmatpush1.msra.mxu0 0.0
        %769 = vmatprep.subr.mxu0 0.0
        %770 = vmatpush1.msra.mxu0 0.0
        %771 = vmatprep.subr.mxu0 0.0
        %772 = vmatpush1.msra.mxu0 0.0
        %773 = vmatprep.subr.mxu0 0.0
        %774 = vmatpush1.msra.mxu0 0.0
        %775 = vmatprep.subr.mxu0 0.0
        %776 = vmatpush1.msra.mxu0 0.0
        %777 = vmatprep.subr.mxu0 0.0
        %778 = vmatpush1.msra.mxu0 0.0
        %779 = vmatprep.subr.mxu0 0.0
        %780 = vmatpush1.msra.mxu0 0.0
        %781 = vmatprep.subr.mxu0 0.0
        %782 = vmatpush1.msra.mxu0 0.0
        %783 = vmatprep.mubr.f32.mxu0 0.0
        %784 = vmatmul.mubr.f32.gmra.mrb[0].mxu0 %v709
        %v785 = vpop.f32.mrb[0].mxu0
        %v786 = vadd.f32 0.0, %v785
        %v787 = vpop.f32.mrb[0].mxu0
        %v788 = vadd.f32 0.0, %v787
        %789 = vdwg.mxu0
        %790 = vmatprep.subr.mxu0 %v648
        %791 = vmatpush1.msra.mxu0 %v647
        %792 = vmatprep.subr.mxu0 %v652
        %793 = vmatpush1.msra.mxu0 %v651
        %794 = vmatprep.subr.mxu0 %v656
        %795 = vmatpush1.msra.mxu0 %v655
        %796 = vmatprep.subr.mxu0 %v660
        %797 = vmatpush1.msra.mxu0 %v659
        %798 = vmatprep.subr.mxu0 %v664
        %799 = vmatpush1.msra.mxu0 %v663
        %800 = vmatprep.subr.mxu0 %v668
        %801 = vmatpush1.msra.mxu0 %v667
        %802 = vmatprep.subr.mxu0 %v672
        %803 = vmatpush1.msra.mxu0 %v671
        %804 = vmatprep.subr.mxu0 %v676
        %805 = vmatpush1.msra.mxu0 %v675
        %806 = vmatprep.subr.mxu0 %v680
        %807 = vmatpush1.msra.mxu0 %v679
        %808 = vmatprep.subr.mxu0 %v684
        %809 = vmatpush1.msra.mxu0 %v683
        %810 = vmatprep.subr.mxu0 %v688
        %811 = vmatpush1.msra.mxu0 %v687
        %812 = vmatprep.subr.mxu0 %v692
        %813 = vmatpush1.msra.mxu0 %v691
        %814 = vmatprep.subr.mxu0 %v696
        %815 = vmatpush1.msra.mxu0 %v695
        %816 = vmatprep.subr.mxu0 %v700
        %817 = vmatpush1.msra.mxu0 %v699
        %818 = vmatprep.subr.mxu0 %v704
        %819 = vmatpush1.msra.mxu0 %v703
        %820 = vmatprep.subr.mxu0 %v708
        %821 = vmatpush1.msra.mxu0 %v707
        %822 = vmatprep.subr.mxu0 0.0
        %823 = vmatpush1.msra.mxu0 0.0
        %824 = vmatprep.subr.mxu0 0.0
        %825 = vmatpush1.msra.mxu0 0.0
        %826 = vmatprep.subr.mxu0 0.0
        %827 = vmatpush1.msra.mxu0 0.0
        %828 = vmatprep.subr.mxu0 0.0
        %829 = vmatpush1.msra.mxu0 0.0
        %830 = vmatprep.subr.mxu0 0.0
        %831 = vmatpush1.msra.mxu0 0.0
        %832 = vmatprep.subr.mxu0 0.0
        %833 = vmatpush1.msra.mxu0 0.0
        %834 = vmatprep.subr.mxu0 0.0
        %835 = vmatpush1.msra.mxu0 0.0
        %836 = vmatprep.subr.mxu0 0.0
        %837 = vmatpush1.msra.mxu0 0.0
        %838 = vmatprep.subr.mxu0 0.0
        %839 = vmatpush1.msra.mxu0 0.0
        %840 = vmatprep.subr.mxu0 0.0
        %841 = vmatpush1.msra.mxu0 0.0
        %842 = vmatprep.subr.mxu0 0.0
        %843 = vmatpush1.msra.mxu0 0.0
        %844 = vmatprep.subr.mxu0 0.0
        %845 = vmatpush1.msra.mxu0 0.0
        %846 = vmatprep.subr.mxu0 0.0
        %847 = vmatpush1.msra.mxu0 0.0
        %848 = vmatprep.subr.mxu0 0.0
        %849 = vmatpush1.msra.mxu0 0.0
        %850 = vmatprep.subr.mxu0 0.0
        %851 = vmatpush1.msra.mxu0 0.0
        %852 = vmatprep.subr.mxu0 0.0
        %853 = vmatpush1.msra.mxu0 0.0
        %854 = vmatprep.mubr.f32.mxu0 0.0
        %855 = vmatmul.mubr.f32.gmra.mrb[0].mxu0 %v709
        %v856 = vpop.f32.mrb[0].mxu0
        %v857 = vadd.f32 0.0, %v856
        %v858 = vpop.f32.mrb[0].mxu0
        %v859 = vadd.f32 0.0, %v858
        %860 = vdwg.mxu0
        %v861 = vadd.f32 %v715, %v786
        %v862 = vadd.f32 %v716, %v788
        %v863 = vadd.f32 %v717, %v857
        %v864 = vadd.f32 %v718, %v859
        %v865 = vxor.u32 %v861, 2147483648
        %v866 = vmul.f32 %v865, 1.442695
        %v867 = vpow.pop %v866
        %v868 = vadd.f32 %v867, 1.0
        %v869 = vrcp.pop %v868
        %v870 = vmul.f32 1.0, %v869
        %v871 = vxor.u32 %v862, 2147483648
        %v872 = vmul.f32 %v871, 1.442695
        %v873 = vpow.pop %v872
        %v874 = vadd.f32 %v873, 1.0
        %v875 = vrcp.pop %v874
        %v876 = vmul.f32 1.0, %v875
        %v877 = vtanh.pop %v863
        %v878 = vxor.u32 %v864, 2147483648
        %v879 = vmul.f32 %v878, 1.442695
        %v880 = vpow.pop %v879
        %v881 = vadd.f32 %v880, 1.0
        %v882 = vrcp.pop %v881
        %v883 = vmul.f32 1.0, %v882
        %v884 = vmul.f32 %v876, %v710
        %v885 = vmul.f32 %v870, %v877
        %v886 = vadd.f32 %v884, %v885
        %v887 = vtanh.pop %v886
        %v888 = vmul.f32 %v883, %v887
        %s889 = smul.u32 %s30, 4
        %p890 = scmp.eq.s32.totalorder %s29, 0
        %s891 = ssub.s32 11, %s889
        %s892 = scalar_select %p890, %s889, %s891
        %v893 = vstv %s892
        %vm894 = vcmp.gt.s32.totalorder %v644, %v893
        %v895 = vsel %vm894, 1, 0
        %896 = vset.pattern.permute.xlu0 0
        %897 = vperm.xlu0 %896, %v895
        %v898 = vpop.permute.xlu0 %897
        %vm899 = vcmp.eq.s32.totalorder %v898, 1
        %v900 = vsel %vm899, %v888, %v709
        %v901 = vsel %vm899, %v886, %v710
        %p902 = scmp.lt.s32.totalorder %s892, 10
        %s903 = scalar_select %p902, 0.0, -inf
        %v904 = vstv %s903
        %v905 = vsel %vm899, %v888, %v904
        %v906 = vmax.f32 %v711, %v905
        %s907 = smul.u32 1, 4
        %s908 = smul.addr %s907, 8
        %s909 = scalar_lea.vmem [#allocation2], %s908
        %v910 = vld [vmem:[%s909] sm:$0xff]
        %v911 = vld [vmem:[%s909 + $0x8] sm:$0xff]
        %v912 = vld [vmem:[%s909 + $0x10] sm:$0xff]
        %v913 = vld [vmem:[%s909 + $0x18] sm:$0xff]
        %914 = vmatprep.subr.mxu0 %v646
        %915 = vmatpush1.msra.mxu0 %v645
        %916 = vmatprep.subr.mxu0 %v650
        %917 = vmatpush1.msra.mxu0 %v649
        %918 = vmatprep.subr.mxu0 %v654
        %919 = vmatpush1.msra.mxu0 %v653
        %920 = vmatprep.subr.mxu0 %v658
        %921 = vmatpush1.msra.mxu0 %v657
        %922 = vmatprep.subr.mxu0 %v662
        %923 = vmatpush1.msra.mxu0 %v661
        %924 = vmatprep.subr.mxu0 %v666
        %925 = vmatpush1.msra.mxu0 %v665
        %926 = vmatprep.subr.mxu0 %v670
        %927 = vmatpush1.msra.mxu0 %v669
        %928 = vmatprep.subr.mxu0 %v674
        %929 = vmatpush1.msra.mxu0 %v673
        %930 = vmatprep.subr.mxu0 %v678
        %931 = vmatpush1.msra.mxu0 %v677
        %932 = vmatprep.subr.mxu0 %v682
        %933 = vmatpush1.msra.mxu0 %v681
        %934 = vmatprep.subr.mxu0 %v686
        %935 = vmatpush1.msra.mxu0 %v685
        %936 = vmatprep.subr.mxu0 %v690
        %937 = vmatpush1.msra.mxu0 %v689
        %938 = vmatprep.subr.mxu0 %v694
        %939 = vmatpush1.msra.mxu0 %v693
        %940 = vmatprep.subr.mxu0 %v698
        %941 = vmatpush1.msra.mxu0 %v697
        %942 = vmatprep.subr.mxu0 %v702
        %943 = vmatpush1.msra.mxu0 %v701
        %944 = vmatprep.subr.mxu0 %v706
        %945 = vmatpush1.msra.mxu0 %v705
        %946 = vmatprep.subr.mxu0 0.0
        %947 = vmatpush1.msra.mxu0 0.0
        %948 = vmatprep.subr.mxu0 0.0
        %949 = vmatpush1.msra.mxu0 0.0
        %950 = vmatprep.subr.mxu0 0.0
        %951 = vmatpush1.msra.mxu0 0.0
        %952 = vmatprep.subr.mxu0 0.0
        %953 = vmatpush1.msra.mxu0 0.0
        %954 = vmatprep.subr.mxu0 0.0
        %955 = vmatpush1.msra.mxu0 0.0
        %956 = vmatprep.subr.mxu0 0.0
        %957 = vmatpush1.msra.mxu0 0.0
        %958 = vmatprep.subr.mxu0 0.0
        %959 = vmatpush1.msra.mxu0 0.0
        %960 = vmatprep.subr.mxu0 0.0
        %961 = vmatpush1.msra.mxu0 0.0
        %962 = vmatprep.subr.mxu0 0.0
        %963 = vmatpush1.msra.mxu0 0.0
        %964 = vmatprep.subr.mxu0 0.0
        %965 = vmatpush1.msra.mxu0 0.0
        %966 = vmatprep.subr.mxu0 0.0
        %967 = vmatpush1.msra.mxu0 0.0
        %968 = vmatprep.subr.mxu0 0.0
        %969 = vmatpush1.msra.mxu0 0.0
        %970 = vmatprep.subr.mxu0 0.0
        %971 = vmatpush1.msra.mxu0 0.0
        %972 = vmatprep.subr.mxu0 0.0
        %973 = vmatpush1.msra.mxu0 0.0
        %974 = vmatprep.subr.mxu0 0.0
        %975 = vmatpush1.msra.mxu0 0.0
        %976 = vmatprep.subr.mxu0 0.0
        %977 = vmatpush1.msra.mxu0 0.0
        %978 = vmatprep.mubr.f32.mxu0 0.0
        %979 = vmatmul.mubr.f32.gmra.mrb[0].mxu0 %v900
        %v980 = vpop.f32.mrb[0].mxu0
        %v981 = vadd.f32 0.0, %v980
        %v982 = vpop.f32.mrb[0].mxu0
        %v983 = vadd.f32 0.0, %v982
        %984 = vdwg.mxu0
        %985 = vmatprep.subr.mxu0 %v648
        %986 = vmatpush1.msra.mxu0 %v647
        %987 = vmatprep.subr.mxu0 %v652
        %988 = vmatpush1.msra.mxu0 %v651
        %989 = vmatprep.subr.mxu0 %v656
        %990 = vmatpush1.msra.mxu0 %v655
        %991 = vmatprep.subr.mxu0 %v660
        %992 = vmatpush1.msra.mxu0 %v659
        %993 = vmatprep.subr.mxu0 %v664
        %994 = vmatpush1.msra.mxu0 %v663
        %995 = vmatprep.subr.mxu0 %v668
        %996 = vmatpush1.msra.mxu0 %v667
        %997 = vmatprep.subr.mxu0 %v672
        %998 = vmatpush1.msra.mxu0 %v671
        %999 = vmatprep.subr.mxu0 %v676
        %1000 = vmatpush1.msra.mxu0 %v675
        %1001 = vmatprep.subr.mxu0 %v680
        %1002 = vmatpush1.msra.mxu0 %v679
        %1003 = vmatprep.subr.mxu0 %v684
        %1004 = vmatpush1.msra.mxu0 %v683
        %1005 = vmatprep.subr.mxu0 %v688
        %1006 = vmatpush1.msra.mxu0 %v687
        %1007 = vmatprep.subr.mxu0 %v692
        %1008 = vmatpush1.msra.mxu0 %v691
        %1009 = vmatprep.subr.mxu0 %v696
        %1010 = vmatpush1.msra.mxu0 %v695
        %1011 = vmatprep.subr.mxu0 %v700
        %1012 = vmatpush1.msra.mxu0 %v699
        %1013 = vmatprep.subr.mxu0 %v704
        %1014 = vmatpush1.msra.mxu0 %v703
        %1015 = vmatprep.subr.mxu0 %v708
        %1016 = vmatpush1.msra.mxu0 %v707
        %1017 = vmatprep.subr.mxu0 0.0
        %1018 = vmatpush1.msra.mxu0 0.0
        %1019 = vmatprep.subr.mxu0 0.0
        %1020 = vmatpush1.msra.mxu0 0.0
        %1021 = vmatprep.subr.mxu0 0.0
        %1022 = vmatpush1.msra.mxu0 0.0
        %1023 = vmatprep.subr.mxu0 0.0
        %1024 = vmatpush1.msra.mxu0 0.0
        %1025 = vmatprep.subr.mxu0 0.0
        %1026 = vmatpush1.msra.mxu0 0.0
        %1027 = vmatprep.subr.mxu0 0.0
        %1028 = vmatpush1.msra.mxu0 0.0
        %1029 = vmatprep.subr.mxu0 0.0
        %1030 = vmatpush1.msra.mxu0 0.0
        %1031 = vmatprep.subr.mxu0 0.0
        %1032 = vmatpush1.msra.mxu0 0.0
        %1033 = vmatprep.subr.mxu0 0.0
        %1034 = vmatpush1.msra.mxu0 0.0
        %1035 = vmatprep.subr.mxu0 0.0
        %1036 = vmatpush1.msra.mxu0 0.0
        %1037 = vmatprep.subr.mxu0 0.0
        %1038 = vmatpush1.msra.mxu0 0.0
        %1039 = vmatprep.subr.mxu0 0.0
        %1040 = vmatpush1.msra.mxu0 0.0
        %1041 = vmatprep.subr.mxu0 0.0
        %1042 = vmatpush1.msra.mxu0 0.0
        %1043 = vmatprep.subr.mxu0 0.0
        %1044 = vmatpush1.msra.mxu0 0.0
        %1045 = vmatprep.subr.mxu0 0.0
        %1046 = vmatpush1.msra.mxu0 0.0
        %1047 = vmatprep.subr.mxu0 0.0
        %1048 = vmatpush1.msra.mxu0 0.0
        %1049 = vmatprep.mubr.f32.mxu0 0.0
        %1050 = vmatmul.mubr.f32.gmra.mrb[0].mxu0 %v900
        %v1051 = vpop.f32.mrb[0].mxu0
        %v1052 = vadd.f32 0.0, %v1051
        %v1053 = vpop.f32.mrb[0].mxu0
        %v1054 = vadd.f32 0.0, %v1053
        %1055 = vdwg.mxu0
        %v1056 = vadd.f32 %v910, %v981
        %v1057 = vadd.f32 %v911, %v983
        %v1058 = vadd.f32 %v912, %v1052
        %v1059 = vadd.f32 %v913, %v1054
        %v1060 = vxor.u32 %v1056, 2147483648
        %v1061 = vmul.f32 %v1060, 1.442695
        %v1062 = vpow.pop %v1061
        %v1063 = vadd.f32 %v1062, 1.0
        %v1064 = vrcp.pop %v1063
        %v1065 = vmul.f32 1.0, %v1064
        %v1066 = vxor.u32 %v1057, 2147483648
        %v1067 = vmul.f32 %v1066, 1.442695
        %v1068 = vpow.pop %v1067
        %v1069 = vadd.f32 %v1068, 1.0
        %v1070 = vrcp.pop %v1069
        %v1071 = vmul.f32 1.0, %v1070
        %v1072 = vtanh.pop %v1058
        %v1073 = vxor.u32 %v1059, 2147483648
        %v1074 = vmul.f32 %v1073, 1.442695
        %v1075 = vpow.pop %v1074
        %v1076 = vadd.f32 %v1075, 1.0
        %v1077 = vrcp.pop %v1076
        %v1078 = vmul.f32 1.0, %v1077
        %v1079 = vmul.f32 %v1071, %v901
        %v1080 = vmul.f32 %v1065, %v1072
        %v1081 = vadd.f32 %v1079, %v1080
        %v1082 = vtanh.pop %v1081
        %v1083 = vmul.f32 %v1078, %v1082
        %s1084 = sadd.s32 %s889, 1
        %s1085 = ssub.s32 10, %s889
        %s1086 = scalar_select %p890, %s1084, %s1085
        %v1087 = vstv %s1086
        %vm1088 = vcmp.gt.s32.totalorder %v644, %v1087
        %v1089 = vsel %vm1088, 1, 0
        %1090 = vset.pattern.permute.xlu0 0
        %1091 = vperm.xlu0 %1090, %v1089
        %v1092 = vpop.permute.xlu0 %1091
        %vm1093 = vcmp.eq.s32.totalorder %v1092, 1
        %v1094 = vsel %vm1093, %v1083, %v900
        %v1095 = vsel %vm1093, %v1081, %v901
        %p1096 = scmp.lt.s32.totalorder %s1086, 10
        %s1097 = scalar_select %p1096, 0.0, -inf
        %v1098 = vstv %s1097
        %v1099 = vsel %vm1093, %v1083, %v1098
        %v1100 = vmax.f32 %v906, %v1099
        %s1101 = smul.u32 2, 4
        %s1102 = smul.addr %s1101, 8
        %s1103 = scalar_lea.vmem [#allocation2], %s1102
        %v1104 = vld [vmem:[%s1103] sm:$0xff]
        %v1105 = vld [vmem:[%s1103 + $0x8] sm:$0xff]
        %v1106 = vld [vmem:[%s1103 + $0x10] sm:$0xff]
        %v1107 = vld [vmem:[%s1103 + $0x18] sm:$0xff]
        %1108 = vmatprep.subr.mxu0 %v646
        %1109 = vmatpush1.msra.mxu0 %v645
        %1110 = vmatprep.subr.mxu0 %v650
        %1111 = vmatpush1.msra.mxu0 %v649
        %1112 = vmatprep.subr.mxu0 %v654
        %1113 = vmatpush1.msra.mxu0 %v653
        %1114 = vmatprep.subr.mxu0 %v658
        %1115 = vmatpush1.msra.mxu0 %v657
        %1116 = vmatprep.subr.mxu0 %v662
        %1117 = vmatpush1.msra.mxu0 %v661
        %1118 = vmatprep.subr.mxu0 %v666
        %1119 = vmatpush1.msra.mxu0 %v665
        %1120 = vmatprep.subr.mxu0 %v670
        %1121 = vmatpush1.msra.mxu0 %v669
        %1122 = vmatprep.subr.mxu0 %v674
        %1123 = vmatpush1.msra.mxu0 %v673
        %1124 = vmatprep.subr.mxu0 %v678
        %1125 = vmatpush1.msra.mxu0 %v677
        %1126 = vmatprep.subr.mxu0 %v682
        %1127 = vmatpush1.msra.mxu0 %v681
        %1128 = vmatprep.subr.mxu0 %v686
        %1129 = vmatpush1.msra.mxu0 %v685
        %1130 = vmatprep.subr.mxu0 %v690
        %1131 = vmatpush1.msra.mxu0 %v689
        %1132 = vmatprep.subr.mxu0 %v694
        %1133 = vmatpush1.msra.mxu0 %v693
        %1134 = vmatprep.subr.mxu0 %v698
        %1135 = vmatpush1.msra.mxu0 %v697
        %1136 = vmatprep.subr.mxu0 %v702
        %1137 = vmatpush1.msra.mxu0 %v701
        %1138 = vmatprep.subr.mxu0 %v706
        %1139 = vmatpush1.msra.mxu0 %v705
        %1140 = vmatprep.subr.mxu0 0.0
        %1141 = vmatpush1.msra.mxu0 0.0
        %1142 = vmatprep.subr.mxu0 0.0
        %1143 = vmatpush1.msra.mxu0 0.0
        %1144 = vmatprep.subr.mxu0 0.0
        %1145 = vmatpush1.msra.mxu0 0.0
        %1146 = vmatprep.subr.mxu0 0.0
        %1147 = vmatpush1.msra.mxu0 0.0
        %1148 = vmatprep.subr.mxu0 0.0
        %1149 = vmatpush1.msra.mxu0 0.0
        %1150 = vmatprep.subr.mxu0 0.0
        %1151 = vmatpush1.msra.mxu0 0.0
        %1152 = vmatprep.subr.mxu0 0.0
        %1153 = vmatpush1.msra.mxu0 0.0
        %1154 = vmatprep.subr.mxu0 0.0
        %1155 = vmatpush1.msra.mxu0 0.0
        %1156 = vmatprep.subr.mxu0 0.0
        %1157 = vmatpush1.msra.mxu0 0.0
        %1158 = vmatprep.subr.mxu0 0.0
        %1159 = vmatpush1.msra.mxu0 0.0
        %1160 = vmatprep.subr.mxu0 0.0
        %1161 = vmatpush1.msra.mxu0 0.0
        %1162 = vmatprep.subr.mxu0 0.0
        %1163 = vmatpush1.msra.mxu0 0.0
        %1164 = vmatprep.subr.mxu0 0.0
        %1165 = vmatpush1.msra.mxu0 0.0
        %1166 = vmatprep.subr.mxu0 0.0
        %1167 = vmatpush1.msra.mxu0 0.0
        %1168 = vmatprep.subr.mxu0 0.0
        %1169 = vmatpush1.msra.mxu0 0.0
        %1170 = vmatprep.subr.mxu0 0.0
        %1171 = vmatpush1.msra.mxu0 0.0
        %1172 = vmatprep.mubr.f32.mxu0 0.0
        %1173 = vmatmul.mubr.f32.gmra.mrb[0].mxu0 %v1094
        %v1174 = vpop.f32.mrb[0].mxu0
        %v1175 = vadd.f32 0.0, %v1174
        %v1176 = vpop.f32.mrb[0].mxu0
        %v1177 = vadd.f32 0.0, %v1176
        %1178 = vdwg.mxu0
        %1179 = vmatprep.subr.mxu0 %v648
        %1180 = vmatpush1.msra.mxu0 %v647
        %1181 = vmatprep.subr.mxu0 %v652
        %1182 = vmatpush1.msra.mxu0 %v651
        %1183 = vmatprep.subr.mxu0 %v656
        %1184 = vmatpush1.msra.mxu0 %v655
        %1185 = vmatprep.subr.mxu0 %v660
        %1186 = vmatpush1.msra.mxu0 %v659
        %1187 = vmatprep.subr.mxu0 %v664
        %1188 = vmatpush1.msra.mxu0 %v663
        %1189 = vmatprep.subr.mxu0 %v668
        %1190 = vmatpush1.msra.mxu0 %v667
        %1191 = vmatprep.subr.mxu0 %v672
        %1192 = vmatpush1.msra.mxu0 %v671
        %1193 = vmatprep.subr.mxu0 %v676
        %1194 = vmatpush1.msra.mxu0 %v675
        %1195 = vmatprep.subr.mxu0 %v680
        %1196 = vmatpush1.msra.mxu0 %v679
        %1197 = vmatprep.subr.mxu0 %v684
        %1198 = vmatpush1.msra.mxu0 %v683
        %1199 = vmatprep.subr.mxu0 %v688
        %1200 = vmatpush1.msra.mxu0 %v687
        %1201 = vmatprep.subr.mxu0 %v692
        %1202 = vmatpush1.msra.mxu0 %v691
        %1203 = vmatprep.subr.mxu0 %v696
        %1204 = vmatpush1.msra.mxu0 %v695
        %1205 = vmatprep.subr.mxu0 %v700
        %1206 = vmatpush1.msra.mxu0 %v699
        %1207 = vmatprep.subr.mxu0 %v704
        %1208 = vmatpush1.msra.mxu0 %v703
        %1209 = vmatprep.subr.mxu0 %v708
        %1210 = vmatpush1.msra.mxu0 %v707
        %1211 = vmatprep.subr.mxu0 0.0
        %1212 = vmatpush1.msra.mxu0 0.0
        %1213 = vmatprep.subr.mxu0 0.0
        %1214 = vmatpush1.msra.mxu0 0.0
        %1215 = vmatprep.subr.mxu0 0.0
        %1216 = vmatpush1.msra.mxu0 0.0
        %1217 = vmatprep.subr.mxu0 0.0
        %1218 = vmatpush1.msra.mxu0 0.0
        %1219 = vmatprep.subr.mxu0 0.0
        %1220 = vmatpush1.msra.mxu0 0.0
        %1221 = vmatprep.subr.mxu0 0.0
        %1222 = vmatpush1.msra.mxu0 0.0
        %1223 = vmatprep.subr.mxu0 0.0
        %1224 = vmatpush1.msra.mxu0 0.0
        %1225 = vmatprep.subr.mxu0 0.0
        %1226 = vmatpush1.msra.mxu0 0.0
        %1227 = vmatprep.subr.mxu0 0.0
        %1228 = vmatpush1.msra.mxu0 0.0
        %1229 = vmatprep.subr.mxu0 0.0
        %1230 = vmatpush1.msra.mxu0 0.0
        %1231 = vmatprep.subr.mxu0 0.0
        %1232 = vmatpush1.msra.mxu0 0.0
        %1233 = vmatprep.subr.mxu0 0.0
        %1234 = vmatpush1.msra.mxu0 0.0
        %1235 = vmatprep.subr.mxu0 0.0
        %1236 = vmatpush1.msra.mxu0 0.0
        %1237 = vmatprep.subr.mxu0 0.0
        %1238 = vmatpush1.msra.mxu0 0.0
        %1239 = vmatprep.subr.mxu0 0.0
        %1240 = vmatpush1.msra.mxu0 0.0
        %1241 = vmatprep.subr.mxu0 0.0
        %1242 = vmatpush1.msra.mxu0 0.0
        %1243 = vmatprep.mubr.f32.mxu0 0.0
        %1244 = vmatmul.mubr.f32.gmra.mrb[0].mxu0 %v1094
        %v1245 = vpop.f32.mrb[0].mxu0
        %v1246 = vadd.f32 0.0, %v1245
        %v1247 = vpop.f32.mrb[0].mxu0
        %v1248 = vadd.f32 0.0, %v1247
        %1249 = vdwg.mxu0
        %v1250 = vadd.f32 %v1104, %v1175
        %v1251 = vadd.f32 %v1105, %v1177
        %v1252 = vadd.f32 %v1106, %v1246
        %v1253 = vadd.f32 %v1107, %v1248
        %v1254 = vxor.u32 %v1250, 2147483648
        %v1255 = vmul.f32 %v1254, 1.442695
        %v1256 = vpow.pop %v1255
        %v1257 = vadd.f32 %v1256, 1.0
        %v1258 = vrcp.pop %v1257
        %v1259 = vmul.f32 1.0, %v1258
        %v1260 = vxor.u32 %v1251, 2147483648
        %v1261 = vmul.f32 %v1260, 1.442695
        %v1262 = vpow.pop %v1261
        %v1263 = vadd.f32 %v1262, 1.0
        %v1264 = vrcp.pop %v1263
        %v1265 = vmul.f32 1.0, %v1264
        %v1266 = vtanh.pop %v1252
        %v1267 = vxor.u32 %v1253, 2147483648
        %v1268 = vmul.f32 %v1267, 1.442695
        %v1269 = vpow.pop %v1268
        %v1270 = vadd.f32 %v1269, 1.0
        %v1271 = vrcp.pop %v1270
        %v1272 = vmul.f32 1.0, %v1271
        %v1273 = vmul.f32 %v1265, %v1095
        %v1274 = vmul.f32 %v1259, %v1266
        %v1275 = vadd.f32 %v1273, %v1274
        %v1276 = vtanh.pop %v1275
        %v1277 = vmul.f32 %v1272, %v1276
        %s1278 = sadd.s32 %s889, 2
        %s1279 = ssub.s32 9, %s889
        %s1280 = scalar_select %p890, %s1278, %s1279
        %v1281 = vstv %s1280
        %vm1282 = vcmp.gt.s32.totalorder %v644, %v1281
        %v1283 = vsel %vm1282, 1, 0
        %1284 = vset.pattern.permute.xlu0 0
        %1285 = vperm.xlu0 %1284, %v1283
        %v1286 = vpop.permute.xlu0 %1285
        %vm1287 = vcmp.eq.s32.totalorder %v1286, 1
        %v1288 = vsel %vm1287, %v1277, %v1094
        %v1289 = vsel %vm1287, %v1275, %v1095
        %p1290 = scmp.lt.s32.totalorder %s1280, 10
        %s1291 = scalar_select %p1290, 0.0, -inf
        %v1292 = vstv %s1291
        %v1293 = vsel %vm1287, %v1277, %v1292
        %v1294 = vmax.f32 %v1100, %v1293
        %s1295 = smul.u32 3, 4
        %s1296 = smul.addr %s1295, 8
        %s1297 = scalar_lea.vmem [#allocation2], %s1296
        %v1298 = vld [vmem:[%s1297] sm:$0xff]
        %v1299 = vld [vmem:[%s1297 + $0x8] sm:$0xff]
        %v1300 = vld [vmem:[%s1297 + $0x10] sm:$0xff]
        %v1301 = vld [vmem:[%s1297 + $0x18] sm:$0xff]
        %1302 = vmatprep.subr.mxu0 %v646
        %1303 = vmatpush1.msra.mxu0 %v645
        %1304 = vmatprep.subr.mxu0 %v650
        %1305 = vmatpush1.msra.mxu0 %v649
        %1306 = vmatprep.subr.mxu0 %v654
        %1307 = vmatpush1.msra.mxu0 %v653
        %1308 = vmatprep.subr.mxu0 %v658
        %1309 = vmatpush1.msra.mxu0 %v657
        %1310 = vmatprep.subr.mxu0 %v662
        %1311 = vmatpush1.msra.mxu0 %v661
        %1312 = vmatprep.subr.mxu0 %v666
        %1313 = vmatpush1.msra.mxu0 %v665
        %1314 = vmatprep.subr.mxu0 %v670
        %1315 = vmatpush1.msra.mxu0 %v669
        %1316 = vmatprep.subr.mxu0 %v674
        %1317 = vmatpush1.msra.mxu0 %v673
        %1318 = vmatprep.subr.mxu0 %v678
        %1319 = vmatpush1.msra.mxu0 %v677
        %1320 = vmatprep.subr.mxu0 %v682
        %1321 = vmatpush1.msra.mxu0 %v681
        %1322 = vmatprep.subr.mxu0 %v686
        %1323 = vmatpush1.msra.mxu0 %v685
        %1324 = vmatprep.subr.mxu0 %v690
        %1325 = vmatpush1.msra.mxu0 %v689
        %1326 = vmatprep.subr.mxu0 %v694
        %1327 = vmatpush1.msra.mxu0 %v693
        %1328 = vmatprep.subr.mxu0 %v698
        %1329 = vmatpush1.msra.mxu0 %v697
        %1330 = vmatprep.subr.mxu0 %v702
        %1331 = vmatpush1.msra.mxu0 %v701
        %1332 = vmatprep.subr.mxu0 %v706
        %1333 = vmatpush1.msra.mxu0 %v705
        %1334 = vmatprep.subr.mxu0 0.0
        %1335 = vmatpush1.msra.mxu0 0.0
        %1336 = vmatprep.subr.mxu0 0.0
        %1337 = vmatpush1.msra.mxu0 0.0
        %1338 = vmatprep.subr.mxu0 0.0
        %1339 = vmatpush1.msra.mxu0 0.0
        %1340 = vmatprep.subr.mxu0 0.0
        %1341 = vmatpush1.msra.mxu0 0.0
        %1342 = vmatprep.subr.mxu0 0.0
        %1343 = vmatpush1.msra.mxu0 0.0
        %1344 = vmatprep.subr.mxu0 0.0
        %1345 = vmatpush1.msra.mxu0 0.0
        %1346 = vmatprep.subr.mxu0 0.0
        %1347 = vmatpush1.msra.mxu0 0.0
        %1348 = vmatprep.subr.mxu0 0.0
        %1349 = vmatpush1.msra.mxu0 0.0
        %1350 = vmatprep.subr.mxu0 0.0
        %1351 = vmatpush1.msra.mxu0 0.0
        %1352 = vmatprep.subr.mxu0 0.0
        %1353 = vmatpush1.msra.mxu0 0.0
        %1354 = vmatprep.subr.mxu0 0.0
        %1355 = vmatpush1.msra.mxu0 0.0
        %1356 = vmatprep.subr.mxu0 0.0
        %1357 = vmatpush1.msra.mxu0 0.0
        %1358 = vmatprep.subr.mxu0 0.0
        %1359 = vmatpush1.msra.mxu0 0.0
        %1360 = vmatprep.subr.mxu0 0.0
        %1361 = vmatpush1.msra.mxu0 0.0
        %1362 = vmatprep.subr.mxu0 0.0
        %1363 = vmatpush1.msra.mxu0 0.0
        %1364 = vmatprep.subr.mxu0 0.0
        %1365 = vmatpush1.msra.mxu0 0.0
        %1366 = vmatprep.mubr.f32.mxu0 0.0
        %1367 = vmatmul.mubr.f32.gmra.mrb[0].mxu0 %v1288
        %v1368 = vpop.f32.mrb[0].mxu0
        %v1369 = vadd.f32 0.0, %v1368
        %v1370 = vpop.f32.mrb[0].mxu0
        %v1371 = vadd.f32 0.0, %v1370
        %1372 = vdwg.mxu0
        %1373 = vmatprep.subr.mxu0 %v648
        %1374 = vmatpush1.msra.mxu0 %v647
        %1375 = vmatprep.subr.mxu0 %v652
        %1376 = vmatpush1.msra.mxu0 %v651
        %1377 = vmatprep.subr.mxu0 %v656
        %1378 = vmatpush1.msra.mxu0 %v655
        %1379 = vmatprep.subr.mxu0 %v660
        %1380 = vmatpush1.msra.mxu0 %v659
        %1381 = vmatprep.subr.mxu0 %v664
        %1382 = vmatpush1.msra.mxu0 %v663
        %1383 = vmatprep.subr.mxu0 %v668
        %1384 = vmatpush1.msra.mxu0 %v667
        %1385 = vmatprep.subr.mxu0 %v672
        %1386 = vmatpush1.msra.mxu0 %v671
        %1387 = vmatprep.subr.mxu0 %v676
        %1388 = vmatpush1.msra.mxu0 %v675
        %1389 = vmatprep.subr.mxu0 %v680
        %1390 = vmatpush1.msra.mxu0 %v679
        %1391 = vmatprep.subr.mxu0 %v684
        %1392 = vmatpush1.msra.mxu0 %v683
        %1393 = vmatprep.subr.mxu0 %v688
        %1394 = vmatpush1.msra.mxu0 %v687
        %1395 = vmatprep.subr.mxu0 %v692
        %1396 = vmatpush1.msra.mxu0 %v691
        %1397 = vmatprep.subr.mxu0 %v696
        %1398 = vmatpush1.msra.mxu0 %v695
        %1399 = vmatprep.subr.mxu0 %v700
        %1400 = vmatpush1.msra.mxu0 %v699
        %1401 = vmatprep.subr.mxu0 %v704
        %1402 = vmatpush1.msra.mxu0 %v703
        %1403 = vmatprep.subr.mxu0 %v708
        %1404 = vmatpush1.msra.mxu0 %v707
        %1405 = vmatprep.subr.mxu0 0.0
        %1406 = vmatpush1.msra.mxu0 0.0
        %1407 = vmatprep.subr.mxu0 0.0
        %1408 = vmatpush1.msra.mxu0 0.0
        %1409 = vmatprep.subr.mxu0 0.0
        %1410 = vmatpush1.msra.mxu0 0.0
        %1411 = vmatprep.subr.mxu0 0.0
        %1412 = vmatpush1.msra.mxu0 0.0
        %1413 = vmatprep.subr.mxu0 0.0
        %1414 = vmatpush1.msra.mxu0 0.0
        %1415 = vmatprep.subr.mxu0 0.0
        %1416 = vmatpush1.msra.mxu0 0.0
        %1417 = vmatprep.subr.mxu0 0.0
        %1418 = vmatpush1.msra.mxu0 0.0
        %1419 = vmatprep.subr.mxu0 0.0
        %1420 = vmatpush1.msra.mxu0 0.0
        %1421 = vmatprep.subr.mxu0 0.0
        %1422 = vmatpush1.msra.mxu0 0.0
        %1423 = vmatprep.subr.mxu0 0.0
        %1424 = vmatpush1.msra.mxu0 0.0
        %1425 = vmatprep.subr.mxu0 0.0
        %1426 = vmatpush1.msra.mxu0 0.0
        %1427 = vmatprep.subr.mxu0 0.0
        %1428 = vmatpush1.msra.mxu0 0.0
        %1429 = vmatprep.subr.mxu0 0.0
        %1430 = vmatpush1.msra.mxu0 0.0
        %1431 = vmatprep.subr.mxu0 0.0
        %1432 = vmatpush1.msra.mxu0 0.0
        %1433 = vmatprep.subr.mxu0 0.0
        %1434 = vmatpush1.msra.mxu0 0.0
        %1435 = vmatprep.subr.mxu0 0.0
        %1436 = vmatpush1.msra.mxu0 0.0
        %1437 = vmatprep.mubr.f32.mxu0 0.0
        %1438 = vmatmul.mubr.f32.gmra.mrb[0].mxu0 %v1288
        %v1439 = vpop.f32.mrb[0].mxu0
        %v1440 = vadd.f32 0.0, %v1439
        %v1441 = vpop.f32.mrb[0].mxu0
        %v1442 = vadd.f32 0.0, %v1441
        %1443 = vdwg.mxu0
        %v1444 = vadd.f32 %v1298, %v1369
        %v1445 = vadd.f32 %v1299, %v1371
        %v1446 = vadd.f32 %v1300, %v1440
        %v1447 = vadd.f32 %v1301, %v1442
        %v1448 = vxor.u32 %v1444, 2147483648
        %v1449 = vmul.f32 %v1448, 1.442695
        %v1450 = vpow.pop %v1449
        %v1451 = vadd.f32 %v1450, 1.0
        %v1452 = vrcp.pop %v1451
        %v1453 = vmul.f32 1.0, %v1452
        %v1454 = vxor.u32 %v1445, 2147483648
        %v1455 = vmul.f32 %v1454, 1.442695
        %v1456 = vpow.pop %v1455
        %v1457 = vadd.f32 %v1456, 1.0
        %v1458 = vrcp.pop %v1457
        %v1459 = vmul.f32 1.0, %v1458
        %v1460 = vtanh.pop %v1446
        %v1461 = vxor.u32 %v1447, 2147483648
        %v1462 = vmul.f32 %v1461, 1.442695
        %v1463 = vpow.pop %v1462
        %v1464 = vadd.f32 %v1463, 1.0
        %v1465 = vrcp.pop %v1464
        %v1466 = vmul.f32 1.0, %v1465
        %v1467 = vmul.f32 %v1459, %v1289
        %v1468 = vmul.f32 %v1453, %v1460
        %v1469 = vadd.f32 %v1467, %v1468
        %v1470 = vtanh.pop %v1469
        %v1471 = vmul.f32 %v1466, %v1470
        %s1472 = sadd.s32 %s889, 3
        %s1473 = ssub.s32 8, %s889
        %s1474 = scalar_select %p890, %s1472, %s1473
        %v1475 = vstv %s1474
        %vm1476 = vcmp.gt.s32.totalorder %v644, %v1475
        %v1477 = vsel %vm1476, 1, 0
        %1478 = vset.pattern.permute.xlu0 0
        %1479 = vperm.xlu0 %1478, %v1477
        %v1480 = vpop.permute.xlu0 %1479
        %vm1481 = vcmp.eq.s32.totalorder %v1480, 1
        %v1482 = vsel %vm1481, %v1471, %v1288
        %v1483 = vsel %vm1481, %v1469, %v1289
        %p1484 = scmp.lt.s32.totalorder %s1474, 10
        %s1485 = scalar_select %p1484, 0.0, -inf
        %v1486 = vstv %s1485
        %v1487 = vsel %vm1481, %v1471, %v1486
        %v1488 = vmax.f32 %v1294, %v1487
        %1489 = vst [vmem:[#allocation3] sm:$0xff] %v1482
        %1490 = vst [vmem:[#allocation4] sm:$0xff] %v1483
        %1491 = vst [vmem:[#allocation5] sm:$0xff] %v1488
        %p1492 = scmp.eq.s32.totalorder %s30, 2
        // Predicated region
        $region57: #{tpu_custom_call.1} parent=39 // pred_check
          %p1493 = pneg %p1492
        $region58: #{tpu_custom_call.1} parent=39 // pred_check_branch
          %1495 = sbr.rel (%p1493) target = $region60
        $region59: #{tpu_custom_call.1} parent=39 // pred_region
          %1496 = vst [vmem:[%s348] sm:$0xff] %v1488
        $region60: #{tpu_custom_call.1} parent=39 // pred_fallthru
          _
        %s1497 = sand.u32 %s172, 1
        %s1498 = scalar_lea.sflag [#allocation8], %s1497
        %s1499 = sand.u32 %s172, 1
        %s1500 = smul.addr %s1499, 8
        %s1501 = scalar_lea.vmem [#allocation12], %s1500
        // Predicated region
        $region61: #{tpu_custom_call.1} parent=39 // pred_check
          %p1502 = pneg %p182
        $region62: #{tpu_custom_call.1} parent=39 // pred_check_branch
          %1504 = sbr.rel (%p1502) target = $region64
        $region63: #{tpu_custom_call.1} parent=39 // pred_region
          %s1506 = ssub.s32 128, 128
          %1507 = vsyncadd %s1498, %s1506
          %s1508 = smul.addr %s29, 128
          %s1509 = scalar_lea.hbm %s5, %s1508
          %s1511 = sshll.u32 %s1501, 4
          %s1512 = int_to_ptr.vmem [resolvable:$true] %s1511
          %1514 = dma.vmem_to_hbm [thread:$0]  %s1512, 128, %s1509, %s1498
        $region64: #{tpu_custom_call.1} parent=39 // pred_fallthru
          _
      $region40: #{tpu_custom_call.1} parent=5 // pred_fallthru
        _
      %p1515 = scmp.le.s32.totalorder 2, %s20
      // Predicated region
      $region65: #{tpu_custom_call.1} parent=5 // pred_check
        %p1516 = pneg %p1515
      $region66: #{tpu_custom_call.1} parent=5 // pred_check_branch
        %1518 = sbr.rel (%p1516) target = $region68
      $region67: #{tpu_custom_call.1} parent=5 // pred_region
        %s1519 = ssub.s32 %s20, 2
        // Predicated region
        $region69: #{tpu_custom_call.1} parent=67 // pred_check
          %p1520 = pneg %p188
        $region70: #{tpu_custom_call.1} parent=67 // pred_check_branch
          %1522 = sbr.rel (%p1520) target = $region72
        $region71: #{tpu_custom_call.1} parent=67 // pred_region
          %s1523 = sand.u32 %s173, 1
          %s1524 = scalar_lea.sflag [#allocation8], %s1523
          %s1525 = sand.u32 %s173, 1
          %s1526 = smul.addr %s1525, 8
          %s1527 = scalar_lea.vmem [#allocation12], %s1526
          %1528 = dma.done %s1524, 128
        $region72: #{tpu_custom_call.1} parent=67 // pred_fallthru
          _
      $region68: #{tpu_custom_call.1} parent=5 // pred_fallthru
        _
    $region6: #{tpu_custom_call.1} parent=1 // loop_footer
      %s24 = sadd.s32 1, %s20
    $region7: #{tpu_custom_call.1} parent=1 // loop_footer_branch
      %19 = sbr.rel target = $region3
    $region8: #{tpu_custom_call.1} parent=1 // loop_exit
      _
    %1529 = vsyncpa [#allocation7], 1
    %s1530 = scalar_lea.sflag [#allocation7], 1
    %1531 = vsyncpa %s1530, 1
    %1532 = vsyncpa [#allocation10], 1
    %s1533 = scalar_lea.sflag [#allocation10], 1
    %1534 = vsyncpa %s1533, 1
    %1535 = vsyncpa [#allocation8], 1
    %s1536 = scalar_lea.sflag [#allocation8], 1
    %1537 = vsyncpa %s1536, 1

</llo_original>
